<compile_context>
chip_gen: v7x
topology: tpu7x:2x2x1
jax: 0.10.0
libtpu: 0.0.40
codegen_flags: <defaults>
</compile_context>

<pallas_src>
import jax
import jax.numpy as jnp
from jax import lax
from jax.experimental import pallas as pl
from jax.experimental.pallas import tpu as pltpu


def _round_up(x, m):
    return (x + m - 1) // m * m


# ------------------------- one-time parameter packing ------------------------

def pack_params(params):
    """Pack every conv tap / 1x1 projection / fc weight into two aligned slabs.

    Returns (w_all, b_all, meta, fc_mat, fc_bias, Cpad, K):
      w_all : (Nmats, Cpad, Cpad) bf16  -- per-tap conv matrices, projections, fc
      b_all : (Nbias, Cpad, 1)    f32   -- biases (f32: added to f32 accumulators)
    """
    blocks = params["blocks"]
    K = blocks[0]["w1"].shape[2]
    cmax = max(max(p["w1"].shape[0], p["w1"].shape[1]) for p in blocks)
    Cpad = _round_up(max(cmax, 8), 8)

    def pad_mat(w):   # (cout, cin) -> (Cpad, Cpad), zero padded
        return jnp.zeros((Cpad, Cpad), jnp.float32).at[: w.shape[0], : w.shape[1]].set(w)

    def pad_bias(b):  # (cout, 1) -> (Cpad, 1), zero padded
        return jnp.zeros((Cpad, 1), jnp.float32).at[: b.shape[0], :].set(b)

    mats, biases, meta = [], [], []
    for p in blocks:
        mat_start, bias_start = len(mats), len(biases)
        for k in range(K):                            # conv1 per-tap matrices
            mats.append(pad_mat(p["w1"][:, :, k]))
        for k in range(K):                            # conv2 per-tap matrices
            mats.append(pad_mat(p["w2"][:, :, k]))
        has_proj = "wi" in p
        if has_proj:
            mats.append(pad_mat(p["wi"]))             # 1x1 identity-link conv
        biases.append(pad_bias(p["b1"]))
        biases.append(pad_bias(p["b2"]))
        if has_proj:
            biases.append(pad_bias(p["bi"]))
        meta.append({"mat_start": mat_start, "bias_start": bias_start,
                     "has_proj": has_proj})
    fc_mat, fc_bias = len(mats), len(biases)
    mats.append(pad_mat(params["w_fc"]))              # Linear(C_out, 1) in row 0
    biases.append(pad_bias(params["b_fc"]))

    w_all = jnp.stack(mats).astype(jnp.bfloat16)      # (Nmats, Cpad, Cpad)
    b_all = jnp.stack(biases)                         # (Nbias, Cpad, 1) f32
    return w_all, b_all, meta, fc_mat, fc_bias, Cpad, K


# ------------------------------ fused kernel --------------------------------

def _make_kernel(meta, K, dil, pad, L, Lpad, fc_mat, fc_bias, has_aux):
    def kernel(*refs):
        if has_aux:
            x_ref, aux_ref, w_ref, b_ref, o_ref = refs
        else:
            x_ref, w_ref, b_ref, o_ref = refs
            aux_ref = None

        # Hoisted lane-position masks: computed once, reused by every conv / block.
        pos = lax.broadcasted_iota(jnp.int32, (1, Lpad), 1)
        lane_valid = pos < L
        tap_valid = {}
        for k in range(K):
            d = k * dil - pad
            if d != 0:
                tap_valid[d] = (pos + d >= 0) & (pos + d < L)

        def conv(h, mat_start, bias_idx):
            # K accumulated (Cpad,Cpad)@(Cpad,Lpad) bf16 MXU matmuls (no im2col concat).
            acc = None
            for k in range(K):
                d = k * dil - pad
                if d == 0:
                    tap = h
                else:
                    tap = jnp.where(tap_valid[d],
                                    pltpu.roll(h, shift=(-d) % Lpad, axis=1), 0.0)
                term = jnp.dot(w_ref[mat_start + k], tap.astype(jnp.bfloat16),
                               preferred_element_type=jnp.float32)
                acc = term if acc is None else acc + term
            return acc + b_ref[bias_idx]

        h = x_ref[0]                                        # (Cpad, Lpad) f32
        for blk_idx, m in enumerate(meta):
            a = jnp.maximum(conv(h, m["mat_start"], m["bias_start"]), 0.0)
            r = conv(a, m["mat_start"] + K, m["bias_start"] + 1)
            if m["has_proj"]:                               # 1x1 conv identity link
                ident = jnp.dot(w_ref[m["mat_start"] + 2 * K], h.astype(jnp.bfloat16),
                                preferred_element_type=jnp.float32) + b_ref[m["bias_start"] + 2]
            else:
                ident = h
            h = jnp.maximum(ident + r, 0.0)                 # after-addition ReLU
            if blk_idx == 0 and has_aux:                    # aux added after input block
                h = h + aux_ref[0]

        # Head: AdaptiveMaxPool1d(1) over valid lanes (single aligned reduce),
        # Squeeze + Dropout(Identity) + Linear(C,1) + Sigmoid.
        pooled = jnp.max(jnp.where(lane_valid, h, -jnp.inf), axis=1, keepdims=True)
        logits = jnp.dot(w_ref[fc_mat], pooled.astype(jnp.bfloat16),
                         preferred_element_type=jnp.float32) + b_ref[fc_bias]
        o_ref[0] = jax.nn.sigmoid(logits[0:1, :])           # (1, 1)

    return kernel


def resnet_forward(x, packed, auxiliary_input=None, dilation=1):
    """Full ResNet forward in a single fused pallas_call. Returns (B,) sigmoid outputs."""
    w_all, b_all, meta, fc_mat, fc_bias, Cpad, K = packed
    B, Cin, L = x.shape
    pad = (K // 2) * dilation
    Lpad = _round_up(L, 128)                        # full-vreg lane axis per sample

    # Per-sample lane-dense layout: (B, Cpad, Lpad), zero padded channels/length.
    x_p = jnp.zeros((B, Cpad, Lpad), jnp.float32).at[:, :Cin, :L].set(x)
    args = [x_p]
    in_specs = [pl.BlockSpec((1, Cpad, Lpad), lambda b: (b, 0, 0))]

    has_aux = auxiliary_input is not None
    if has_aux:
        Ca, La = auxiliary_input.shape[1], auxiliary_input.shape[2]
        aux_p = jnp.zeros((B, Cpad, Lpad), jnp.float32).at[:, :Ca, :La].set(auxiliary_input)
        args.append(aux_p)
        in_specs.append(pl.BlockSpec((1, Cpad, Lpad), lambda b: (b, 0, 0)))

    args += [w_all, b_all]
    in_specs += [pl.BlockSpec(tuple(w_all.shape), lambda b: (0, 0, 0)),
                 pl.BlockSpec(tuple(b_all.shape), lambda b: (0, 0, 0))]

    kernel = _make_kernel(meta, K, dilation, pad, L, Lpad, fc_mat, fc_bias, has_aux)

    flops_per_sample = 0
    for m in meta:
        flops_per_sample += 2 * (2 * K * Cpad * Cpad * Lpad)     # conv1 + conv2
        if m["has_proj"]:
            flops_per_sample += 2 * Cpad * Cpad * Lpad
    flops_per_sample += 2 * Cpad * Cpad                          # fc
    bytes_accessed = sum(int(a.size) * a.dtype.itemsize for a in args) + B * 4

    out = pl.pallas_call(
        kernel,
        out_shape=jax.ShapeDtypeStruct((B, 1, 1), jnp.float32),
        grid_spec=pltpu.PrefetchScalarGridSpec(
            num_scalar_prefetch=0,
            grid=(B,),
            in_specs=in_specs,
            out_specs=pl.BlockSpec((1, 1, 1), lambda b: (b, 0, 0))),
        compiler_params=pltpu.CompilerParams(
            dimension_semantics=("parallel",),       # both TCs on v7x; no-op on v5e/v6e
            vmem_limit_bytes=32 * 1024 * 1024),
        cost_estimate=pl.CostEstimate(flops=B * flops_per_sample,
                                      transcendentals=B,
                                      bytes_accessed=bytes_accessed),
    )(*args)
    return out[:, 0, 0]                              # Squeeze -> (B,)


# ----------------------------- parameter init --------------------------------

def init_resblock_params(key, cin, cout, K):
    ks = jax.random.split(key, 6)
    p = {
        "w1": 0.2 * jax.random.normal(ks[0], (cout, cin, K), jnp.float32),
        "b1": 0.05 * jax.random.normal(ks[1], (cout, 1), jnp.float32),
        "w2": 0.2 * jax.random.normal(ks[2], (cout, cout, K), jnp.float32),
        "b2": 0.05 * jax.random.normal(ks[3], (cout, 1), jnp.float32),
    }
    if cin != cout:  # 1x1 conv identity link
        p["wi"] = 0.2 * jax.random.normal(ks[4], (cout, cin), jnp.float32)
        p["bi"] = 0.05 * jax.random.normal(ks[5], (cout, 1), jnp.float32)
    return p


# ----------------------- pure-JAX reference (checking) -----------------------

def _q(v):
    # bf16 round-trip: mirrors the kernel's bf16 MXU operands exactly (products are
    # exact in f32; only accumulation order differs).
    return v.astype(jnp.bfloat16).astype(jnp.float32)


def _conv1d_ref(x, w, b, dil, pad):
    y = lax.conv_general_dilated(_q(x), _q(w), window_strides=(1,), padding=[(pad, pad)],
                                 rhs_dilation=(dil,),
                                 dimension_numbers=("NCH", "OIH", "NCH"))
    return y + b[None]


def _resblock_ref(x, p, dil):
    K = p["w1"].shape[2]
    pad = (K // 2) * dil
    h = jnp.maximum(_conv1d_ref(x, p["w1"], p["b1"], dil, pad), 0.0)
    r = _conv1d_ref(h, p["w2"], p["b2"], dil, pad)
    if "wi" in p:
        ident = jnp.einsum("oc,bcl->bol", _q(p["wi"]), _q(x)) + p["bi"][None]
    else:
        ident = x
    return jnp.maximum(ident + r, 0.0)


def resnet_ref(x, params, auxiliary_input=None):
    blocks = params["blocks"]
    h = _resblock_ref(x, blocks[0], 1)
    if auxiliary_input is not None:
        h = h + auxiliary_input
    for p in blocks[1:]:
        h = _resblock_ref(h, p, 1)
    pooled = jnp.max(h, axis=-1)                                     # (B, C)
    logits = _q(pooled) @ _q(params["w_fc"]).T + params["b_fc"]      # (B, 1)
    return jax.nn.sigmoid(logits)[:, 0]


# ---------------------------------- main -------------------------------------

if __name__ == "__main__":
    B, L = 2, 16                  # batch, dim_series
    C_in, C_lat, C_out = 4, 8, 8  # num_input/latent/output_channels
    K = 3                         # size_kernel
    num_resblock = 3

    key = jax.random.PRNGKey(0)
    keys = jax.random.split(key, num_resblock + 3)

    blocks = [init_resblock_params(keys[0], C_in, C_lat, K)]
    for i in range(1, num_resblock - 1):
        blocks.append(init_resblock_params(keys[i], C_lat, C_lat, K))
    blocks.append(init_resblock_params(keys[num_resblock - 1], C_lat, C_out, K))

    # nn.Linear(C_out, 1): weight (1, C_out), bias (1, 1).
    w_fc = 0.2 * jax.random.normal(keys[num_resblock], (1, C_out), jnp.float32)
    b_fc = 0.05 * jax.random.normal(keys[num_resblock + 1], (1, 1), jnp.float32)
    params = {"blocks": blocks, "w_fc": w_fc, "b_fc": b_fc}

    # One-time weight packing / bf16 cast (kept OUT of the forward pass).
    packed = pack_params(params)

    x = jax.random.normal(jax.random.PRNGKey(1), (B, C_in, L), jnp.float32)
    aux = 0.1 * jax.random.normal(keys[num_resblock + 2], (B, C_lat, L), jnp.float32)

    # Without auxiliary input.
    y = jax.block_until_ready(resnet_forward(x, packed))
    y_ref = resnet_ref(x, params)
    assert y.shape == (B,)
    assert jnp.allclose(y, y_ref, atol=1e-4, rtol=1e-4), (y, y_ref)

    # With auxiliary input (added after the input resblock, as in _ResCNN.forward).
    y_aux = jax.block_until_ready(resnet_forward(x, packed, auxiliary_input=aux))
    y_aux_ref = resnet_ref(x, params, auxiliary_input=aux)
    assert jnp.allclose(y_aux, y_aux_ref, atol=1e-4, rtol=1e-4), (y_aux, y_aux_ref)

    print("KERNEL_OK")
</pallas_src>

<mosaic_0001>
module attributes {stable_mosaic.version = 11 : i64} {
  func.func @kernel(%arg0: i32, %arg1: memref<1x8x128xf32, #tpu.memory_space<vmem>>, %arg2: memref<20x8x8xbf16, #tpu.memory_space<vmem>>, %arg3: memref<8x8x1xf32, #tpu.memory_space<vmem>>, %arg4: memref<1x1x1xf32, #tpu.memory_space<vmem>>) attributes {dimension_semantics = [#tpu.dimension_semantics<parallel>], iteration_bounds = array<i64: 2>, scalar_prefetch = 0 : i64, scratch_operands = 0 : i64, tpu.core_type = #tpu.core_type<tc>, window_params = [{transform_indices = @transform_0, window_bounds = array<i64: 1, 8, 128>}, {pipeline_mode = #tpu.pipeline_mode<synchronous>, transform_indices = @transform_1, window_bounds = array<i64: 20, 8, 8>}, {pipeline_mode = #tpu.pipeline_mode<synchronous>, transform_indices = @transform_2, window_bounds = array<i64: 8, 8, 1>}, {transform_indices = @transform_3, window_bounds = array<i64: 1, 1, 1>}]} {
    %0 = tpu.iota {dimensions = array<i32: 1>} : vector<1x128xi32>
    %c16_i32 = arith.constant 16 : i32
    %1 = vector.broadcast %c16_i32 : i32 to vector<1x128xi32>
    %2 = arith.cmpi slt, %0, %1 : vector<1x128xi32>
    %c-1_i32 = arith.constant -1 : i32
    %3 = vector.broadcast %c-1_i32 : i32 to vector<1x128xi32>
    %4 = arith.addi %0, %3 : vector<1x128xi32>
    %c0_i32 = arith.constant 0 : i32
    %5 = vector.broadcast %c0_i32 : i32 to vector<1x128xi32>
    %6 = arith.cmpi sge, %4, %5 : vector<1x128xi32>
    %c-1_i32_0 = arith.constant -1 : i32
    %7 = vector.broadcast %c-1_i32_0 : i32 to vector<1x128xi32>
    %8 = arith.addi %0, %7 : vector<1x128xi32>
    %c16_i32_1 = arith.constant 16 : i32
    %9 = vector.broadcast %c16_i32_1 : i32 to vector<1x128xi32>
    %10 = arith.cmpi slt, %8, %9 : vector<1x128xi32>
    %11 = arith.andi %6, %10 : vector<1x128xi1>
    %c1_i32 = arith.constant 1 : i32
    %12 = vector.broadcast %c1_i32 : i32 to vector<1x128xi32>
    %13 = arith.addi %0, %12 : vector<1x128xi32>
    %c0_i32_2 = arith.constant 0 : i32
    %14 = vector.broadcast %c0_i32_2 : i32 to vector<1x128xi32>
    %15 = arith.cmpi sge, %13, %14 : vector<1x128xi32>
    %c1_i32_3 = arith.constant 1 : i32
    %16 = vector.broadcast %c1_i32_3 : i32 to vector<1x128xi32>
    %17 = arith.addi %0, %16 : vector<1x128xi32>
    %c16_i32_4 = arith.constant 16 : i32
    %18 = vector.broadcast %c16_i32_4 : i32 to vector<1x128xi32>
    %19 = arith.cmpi slt, %17, %18 : vector<1x128xi32>
    %20 = arith.andi %15, %19 : vector<1x128xi1>
    %c0 = arith.constant 0 : index
    %c0_5 = arith.constant 0 : index
    %c0_6 = arith.constant 0 : index
    %21 = vector.load %arg1[%c0, %c0_5, %c0_6] : memref<1x8x128xf32, #tpu.memory_space<vmem>>, vector<1x8x128xf32>
    %22 = vector.shape_cast %21 : vector<1x8x128xf32> to vector<8x128xf32>
    %c1_i32_7 = arith.constant 1 : i32
    %23 = tpu.dynamic_rotate %22 by %c1_i32_7 dim 1 : vector<8x128xf32>, i32 -> vector<8x128xf32>
    %cst = arith.constant 0.000000e+00 : f32
    %24 = vector.shape_cast %11 : vector<1x128xi1> to vector<1x128xi1>
    %25 = vector.broadcast %24 : vector<1x128xi1> to vector<8x128xi1>
    %26 = vector.broadcast %cst : f32 to vector<8x128xf32>
    %27 = arith.select %25, %23, %26 : vector<8x128xi1>, vector<8x128xf32>
    %c0_8 = arith.constant 0 : index
    %c0_9 = arith.constant 0 : index
    %c0_10 = arith.constant 0 : index
    %28 = vector.load %arg2[%c0_8, %c0_9, %c0_10] : memref<20x8x8xbf16, #tpu.memory_space<vmem>>, vector<1x8x8xbf16>
    %29 = vector.shape_cast %28 : vector<1x8x8xbf16> to vector<8x8xbf16>
    %30 = arith.truncf %27 : vector<8x128xf32> to vector<8x128xbf16>
    %cst_11 = arith.constant dense<0.000000e+00> : vector<8x128xf32>
    %31 = tpu.matmul %29, %30, %cst_11 {dimension_numbers = #tpu.dot_dimension_numbers<[1], [0], [0], [1], [0, 0, 1, 1], [], []>} : vector<8x8xbf16>, vector<8x128xbf16>, vector<8x128xf32> -> vector<8x128xf32>
    %c1 = arith.constant 1 : index
    %c0_12 = arith.constant 0 : index
    %c0_13 = arith.constant 0 : index
    %32 = vector.load %arg2[%c1, %c0_12, %c0_13] : memref<20x8x8xbf16, #tpu.memory_space<vmem>>, vector<1x8x8xbf16>
    %33 = vector.shape_cast %32 : vector<1x8x8xbf16> to vector<8x8xbf16>
    %34 = arith.truncf %22 : vector<8x128xf32> to vector<8x128xbf16>
    %cst_14 = arith.constant dense<0.000000e+00> : vector<8x128xf32>
    %35 = tpu.matmul %33, %34, %cst_14 {dimension_numbers = #tpu.dot_dimension_numbers<[1], [0], [0], [1], [0, 0, 1, 1], [], []>} : vector<8x8xbf16>, vector<8x128xbf16>, vector<8x128xf32> -> vector<8x128xf32>
    %36 = arith.addf %31, %35 : vector<8x128xf32>
    %c127_i32 = arith.constant 127 : i32
    %37 = tpu.dynamic_rotate %22 by %c127_i32 dim 1 : vector<8x128xf32>, i32 -> vector<8x128xf32>
    %cst_15 = arith.constant 0.000000e+00 : f32
    %38 = vector.shape_cast %20 : vector<1x128xi1> to vector<1x128xi1>
    %39 = vector.broadcast %38 : vector<1x128xi1> to vector<8x128xi1>
    %40 = vector.broadcast %cst_15 : f32 to vector<8x128xf32>
    %41 = arith.select %39, %37, %40 : vector<8x128xi1>, vector<8x128xf32>
    %c2 = arith.constant 2 : index
    %c0_16 = arith.constant 0 : index
    %c0_17 = arith.constant 0 : index
    %42 = vector.load %arg2[%c2, %c0_16, %c0_17] : memref<20x8x8xbf16, #tpu.memory_space<vmem>>, vector<1x8x8xbf16>
    %43 = vector.shape_cast %42 : vector<1x8x8xbf16> to vector<8x8xbf16>
    %44 = arith.truncf %41 : vector<8x128xf32> to vector<8x128xbf16>
    %cst_18 = arith.constant dense<0.000000e+00> : vector<8x128xf32>
    %45 = tpu.matmul %43, %44, %cst_18 {dimension_numbers = #tpu.dot_dimension_numbers<[1], [0], [0], [1], [0, 0, 1, 1], [], []>} : vector<8x8xbf16>, vector<8x128xbf16>, vector<8x128xf32> -> vector<8x128xf32>
    %46 = arith.addf %36, %45 : vector<8x128xf32>
    %c0_19 = arith.constant 0 : index
    %c0_20 = arith.constant 0 : index
    %c0_21 = arith.constant 0 : index
    %47 = vector.load %arg3[%c0_19, %c0_20, %c0_21] : memref<8x8x1xf32, #tpu.memory_space<vmem>>, vector<1x8x1xf32>
    %48 = vector.shape_cast %47 : vector<1x8x1xf32> to vector<8x1xf32>
    %49 = vector.broadcast %48 : vector<8x1xf32> to vector<8x128xf32>
    %50 = arith.addf %46, %49 : vector<8x128xf32>
    %cst_22 = arith.constant 0.000000e+00 : f32
    %51 = vector.broadcast %cst_22 : f32 to vector<8x128xf32>
    %52 = arith.maximumf %50, %51 : vector<8x128xf32>
    %c1_i32_23 = arith.constant 1 : i32
    %53 = tpu.dynamic_rotate %52 by %c1_i32_23 dim 1 : vector<8x128xf32>, i32 -> vector<8x128xf32>
    %cst_24 = arith.constant 0.000000e+00 : f32
    %54 = vector.shape_cast %11 : vector<1x128xi1> to vector<1x128xi1>
    %55 = vector.broadcast %54 : vector<1x128xi1> to vector<8x128xi1>
    %56 = vector.broadcast %cst_24 : f32 to vector<8x128xf32>
    %57 = arith.select %55, %53, %56 : vector<8x128xi1>, vector<8x128xf32>
    %c3 = arith.constant 3 : index
    %c0_25 = arith.constant 0 : index
    %c0_26 = arith.constant 0 : index
    %58 = vector.load %arg2[%c3, %c0_25, %c0_26] : memref<20x8x8xbf16, #tpu.memory_space<vmem>>, vector<1x8x8xbf16>
    %59 = vector.shape_cast %58 : vector<1x8x8xbf16> to vector<8x8xbf16>
    %60 = arith.truncf %57 : vector<8x128xf32> to vector<8x128xbf16>
    %cst_27 = arith.constant dense<0.000000e+00> : vector<8x128xf32>
    %61 = tpu.matmul %59, %60, %cst_27 {dimension_numbers = #tpu.dot_dimension_numbers<[1], [0], [0], [1], [0, 0, 1, 1], [], []>} : vector<8x8xbf16>, vector<8x128xbf16>, vector<8x128xf32> -> vector<8x128xf32>
    %c4 = arith.constant 4 : index
    %c0_28 = arith.constant 0 : index
    %c0_29 = arith.constant 0 : index
    %62 = vector.load %arg2[%c4, %c0_28, %c0_29] : memref<20x8x8xbf16, #tpu.memory_space<vmem>>, vector<1x8x8xbf16>
    %63 = vector.shape_cast %62 : vector<1x8x8xbf16> to vector<8x8xbf16>
    %64 = arith.truncf %52 : vector<8x128xf32> to vector<8x128xbf16>
    %cst_30 = arith.constant dense<0.000000e+00> : vector<8x128xf32>
    %65 = tpu.matmul %63, %64, %cst_30 {dimension_numbers = #tpu.dot_dimension_numbers<[1], [0], [0], [1], [0, 0, 1, 1], [], []>} : vector<8x8xbf16>, vector<8x128xbf16>, vector<8x128xf32> -> vector<8x128xf32>
    %66 = arith.addf %61, %65 : vector<8x128xf32>
    %c127_i32_31 = arith.constant 127 : i32
    %67 = tpu.dynamic_rotate %52 by %c127_i32_31 dim 1 : vector<8x128xf32>, i32 -> vector<8x128xf32>
    %cst_32 = arith.constant 0.000000e+00 : f32
    %68 = vector.shape_cast %20 : vector<1x128xi1> to vector<1x128xi1>
    %69 = vector.broadcast %68 : vector<1x128xi1> to vector<8x128xi1>
    %70 = vector.broadcast %cst_32 : f32 to vector<8x128xf32>
    %71 = arith.select %69, %67, %70 : vector<8x128xi1>, vector<8x128xf32>
    %c5 = arith.constant 5 : index
    %c0_33 = arith.constant 0 : index
    %c0_34 = arith.constant 0 : index
    %72 = vector.load %arg2[%c5, %c0_33, %c0_34] : memref<20x8x8xbf16, #tpu.memory_space<vmem>>, vector<1x8x8xbf16>
    %73 = vector.shape_cast %72 : vector<1x8x8xbf16> to vector<8x8xbf16>
    %74 = arith.truncf %71 : vector<8x128xf32> to vector<8x128xbf16>
    %cst_35 = arith.constant dense<0.000000e+00> : vector<8x128xf32>
    %75 = tpu.matmul %73, %74, %cst_35 {dimension_numbers = #tpu.dot_dimension_numbers<[1], [0], [0], [1], [0, 0, 1, 1], [], []>} : vector<8x8xbf16>, vector<8x128xbf16>, vector<8x128xf32> -> vector<8x128xf32>
    %76 = arith.addf %66, %75 : vector<8x128xf32>
    %c1_36 = arith.constant 1 : index
    %c0_37 = arith.constant 0 : index
    %c0_38 = arith.constant 0 : index
    %77 = vector.load %arg3[%c1_36, %c0_37, %c0_38] : memref<8x8x1xf32, #tpu.memory_space<vmem>>, vector<1x8x1xf32>
    %78 = vector.shape_cast %77 : vector<1x8x1xf32> to vector<8x1xf32>
    %79 = vector.broadcast %78 : vector<8x1xf32> to vector<8x128xf32>
    %80 = arith.addf %76, %79 : vector<8x128xf32>
    %c6 = arith.constant 6 : index
    %c0_39 = arith.constant 0 : index
    %c0_40 = arith.constant 0 : index
    %81 = vector.load %arg2[%c6, %c0_39, %c0_40] : memref<20x8x8xbf16, #tpu.memory_space<vmem>>, vector<1x8x8xbf16>
    %82 = vector.shape_cast %81 : vector<1x8x8xbf16> to vector<8x8xbf16>
    %83 = arith.truncf %22 : vector<8x128xf32> to vector<8x128xbf16>
    %cst_41 = arith.constant dense<0.000000e+00> : vector<8x128xf32>
    %84 = tpu.matmul %82, %83, %cst_41 {dimension_numbers = #tpu.dot_dimension_numbers<[1], [0], [0], [1], [0, 0, 1, 1], [], []>} : vector<8x8xbf16>, vector<8x128xbf16>, vector<8x128xf32> -> vector<8x128xf32>
    %c2_42 = arith.constant 2 : index
    %c0_43 = arith.constant 0 : index
    %c0_44 = arith.constant 0 : index
    %85 = vector.load %arg3[%c2_42, %c0_43, %c0_44] : memref<8x8x1xf32, #tpu.memory_space<vmem>>, vector<1x8x1xf32>
    %86 = vector.shape_cast %85 : vector<1x8x1xf32> to vector<8x1xf32>
    %87 = vector.broadcast %86 : vector<8x1xf32> to vector<8x128xf32>
    %88 = arith.addf %84, %87 : vector<8x128xf32>
    %89 = arith.addf %88, %80 : vector<8x128xf32>
    %cst_45 = arith.constant 0.000000e+00 : f32
    %90 = vector.broadcast %cst_45 : f32 to vector<8x128xf32>
    %91 = arith.maximumf %89, %90 : vector<8x128xf32>
    %c1_i32_46 = arith.constant 1 : i32
    %92 = tpu.dynamic_rotate %91 by %c1_i32_46 dim 1 : vector<8x128xf32>, i32 -> vector<8x128xf32>
    %cst_47 = arith.constant 0.000000e+00 : f32
    %93 = vector.shape_cast %11 : vector<1x128xi1> to vector<1x128xi1>
    %94 = vector.broadcast %93 : vector<1x128xi1> to vector<8x128xi1>
    %95 = vector.broadcast %cst_47 : f32 to vector<8x128xf32>
    %96 = arith.select %94, %92, %95 : vector<8x128xi1>, vector<8x128xf32>
    %c7 = arith.constant 7 : index
    %c0_48 = arith.constant 0 : index
    %c0_49 = arith.constant 0 : index
    %97 = vector.load %arg2[%c7, %c0_48, %c0_49] : memref<20x8x8xbf16, #tpu.memory_space<vmem>>, vector<1x8x8xbf16>
    %98 = vector.shape_cast %97 : vector<1x8x8xbf16> to vector<8x8xbf16>
    %99 = arith.truncf %96 : vector<8x128xf32> to vector<8x128xbf16>
    %cst_50 = arith.constant dense<0.000000e+00> : vector<8x128xf32>
    %100 = tpu.matmul %98, %99, %cst_50 {dimension_numbers = #tpu.dot_dimension_numbers<[1], [0], [0], [1], [0, 0, 1, 1], [], []>} : vector<8x8xbf16>, vector<8x128xbf16>, vector<8x128xf32> -> vector<8x128xf32>
    %c8 = arith.constant 8 : index
    %c0_51 = arith.constant 0 : index
    %c0_52 = arith.constant 0 : index
    %101 = vector.load %arg2[%c8, %c0_51, %c0_52] : memref<20x8x8xbf16, #tpu.memory_space<vmem>>, vector<1x8x8xbf16>
    %102 = vector.shape_cast %101 : vector<1x8x8xbf16> to vector<8x8xbf16>
    %103 = arith.truncf %91 : vector<8x128xf32> to vector<8x128xbf16>
    %cst_53 = arith.constant dense<0.000000e+00> : vector<8x128xf32>
    %104 = tpu.matmul %102, %103, %cst_53 {dimension_numbers = #tpu.dot_dimension_numbers<[1], [0], [0], [1], [0, 0, 1, 1], [], []>} : vector<8x8xbf16>, vector<8x128xbf16>, vector<8x128xf32> -> vector<8x128xf32>
    %105 = arith.addf %100, %104 : vector<8x128xf32>
    %c127_i32_54 = arith.constant 127 : i32
    %106 = tpu.dynamic_rotate %91 by %c127_i32_54 dim 1 : vector<8x128xf32>, i32 -> vector<8x128xf32>
    %cst_55 = arith.constant 0.000000e+00 : f32
    %107 = vector.shape_cast %20 : vector<1x128xi1> to vector<1x128xi1>
    %108 = vector.broadcast %107 : vector<1x128xi1> to vector<8x128xi1>
    %109 = vector.broadcast %cst_55 : f32 to vector<8x128xf32>
    %110 = arith.select %108, %106, %109 : vector<8x128xi1>, vector<8x128xf32>
    %c9 = arith.constant 9 : index
    %c0_56 = arith.constant 0 : index
    %c0_57 = arith.constant 0 : index
    %111 = vector.load %arg2[%c9, %c0_56, %c0_57] : memref<20x8x8xbf16, #tpu.memory_space<vmem>>, vector<1x8x8xbf16>
    %112 = vector.shape_cast %111 : vector<1x8x8xbf16> to vector<8x8xbf16>
    %113 = arith.truncf %110 : vector<8x128xf32> to vector<8x128xbf16>
    %cst_58 = arith.constant dense<0.000000e+00> : vector<8x128xf32>
    %114 = tpu.matmul %112, %113, %cst_58 {dimension_numbers = #tpu.dot_dimension_numbers<[1], [0], [0], [1], [0, 0, 1, 1], [], []>} : vector<8x8xbf16>, vector<8x128xbf16>, vector<8x128xf32> -> vector<8x128xf32>
    %115 = arith.addf %105, %114 : vector<8x128xf32>
    %c3_59 = arith.constant 3 : index
    %c0_60 = arith.constant 0 : index
    %c0_61 = arith.constant 0 : index
    %116 = vector.load %arg3[%c3_59, %c0_60, %c0_61] : memref<8x8x1xf32, #tpu.memory_space<vmem>>, vector<1x8x1xf32>
    %117 = vector.shape_cast %116 : vector<1x8x1xf32> to vector<8x1xf32>
    %118 = vector.broadcast %117 : vector<8x1xf32> to vector<8x128xf32>
    %119 = arith.addf %115, %118 : vector<8x128xf32>
    %cst_62 = arith.constant 0.000000e+00 : f32
    %120 = vector.broadcast %cst_62 : f32 to vector<8x128xf32>
    %121 = arith.maximumf %119, %120 : vector<8x128xf32>
    %c1_i32_63 = arith.constant 1 : i32
    %122 = tpu.dynamic_rotate %121 by %c1_i32_63 dim 1 : vector<8x128xf32>, i32 -> vector<8x128xf32>
    %cst_64 = arith.constant 0.000000e+00 : f32
    %123 = vector.shape_cast %11 : vector<1x128xi1> to vector<1x128xi1>
    %124 = vector.broadcast %123 : vector<1x128xi1> to vector<8x128xi1>
    %125 = vector.broadcast %cst_64 : f32 to vector<8x128xf32>
    %126 = arith.select %124, %122, %125 : vector<8x128xi1>, vector<8x128xf32>
    %c10 = arith.constant 10 : index
    %c0_65 = arith.constant 0 : index
    %c0_66 = arith.constant 0 : index
    %127 = vector.load %arg2[%c10, %c0_65, %c0_66] : memref<20x8x8xbf16, #tpu.memory_space<vmem>>, vector<1x8x8xbf16>
    %128 = vector.shape_cast %127 : vector<1x8x8xbf16> to vector<8x8xbf16>
    %129 = arith.truncf %126 : vector<8x128xf32> to vector<8x128xbf16>
    %cst_67 = arith.constant dense<0.000000e+00> : vector<8x128xf32>
    %130 = tpu.matmul %128, %129, %cst_67 {dimension_numbers = #tpu.dot_dimension_numbers<[1], [0], [0], [1], [0, 0, 1, 1], [], []>} : vector<8x8xbf16>, vector<8x128xbf16>, vector<8x128xf32> -> vector<8x128xf32>
    %c11 = arith.constant 11 : index
    %c0_68 = arith.constant 0 : index
    %c0_69 = arith.constant 0 : index
    %131 = vector.load %arg2[%c11, %c0_68, %c0_69] : memref<20x8x8xbf16, #tpu.memory_space<vmem>>, vector<1x8x8xbf16>
    %132 = vector.shape_cast %131 : vector<1x8x8xbf16> to vector<8x8xbf16>
    %133 = arith.truncf %121 : vector<8x128xf32> to vector<8x128xbf16>
    %cst_70 = arith.constant dense<0.000000e+00> : vector<8x128xf32>
    %134 = tpu.matmul %132, %133, %cst_70 {dimension_numbers = #tpu.dot_dimension_numbers<[1], [0], [0], [1], [0, 0, 1, 1], [], []>} : vector<8x8xbf16>, vector<8x128xbf16>, vector<8x128xf32> -> vector<8x128xf32>
    %135 = arith.addf %130, %134 : vector<8x128xf32>
    %c127_i32_71 = arith.constant 127 : i32
    %136 = tpu.dynamic_rotate %121 by %c127_i32_71 dim 1 : vector<8x128xf32>, i32 -> vector<8x128xf32>
    %cst_72 = arith.constant 0.000000e+00 : f32
    %137 = vector.shape_cast %20 : vector<1x128xi1> to vector<1x128xi1>
    %138 = vector.broadcast %137 : vector<1x128xi1> to vector<8x128xi1>
    %139 = vector.broadcast %cst_72 : f32 to vector<8x128xf32>
    %140 = arith.select %138, %136, %139 : vector<8x128xi1>, vector<8x128xf32>
    %c12 = arith.constant 12 : index
    %c0_73 = arith.constant 0 : index
    %c0_74 = arith.constant 0 : index
    %141 = vector.load %arg2[%c12, %c0_73, %c0_74] : memref<20x8x8xbf16, #tpu.memory_space<vmem>>, vector<1x8x8xbf16>
    %142 = vector.shape_cast %141 : vector<1x8x8xbf16> to vector<8x8xbf16>
    %143 = arith.truncf %140 : vector<8x128xf32> to vector<8x128xbf16>
    %cst_75 = arith.constant dense<0.000000e+00> : vector<8x128xf32>
    %144 = tpu.matmul %142, %143, %cst_75 {dimension_numbers = #tpu.dot_dimension_numbers<[1], [0], [0], [1], [0, 0, 1, 1], [], []>} : vector<8x8xbf16>, vector<8x128xbf16>, vector<8x128xf32> -> vector<8x128xf32>
    %145 = arith.addf %135, %144 : vector<8x128xf32>
    %c4_76 = arith.constant 4 : index
    %c0_77 = arith.constant 0 : index
    %c0_78 = arith.constant 0 : index
    %146 = vector.load %arg3[%c4_76, %c0_77, %c0_78] : memref<8x8x1xf32, #tpu.memory_space<vmem>>, vector<1x8x1xf32>
    %147 = vector.shape_cast %146 : vector<1x8x1xf32> to vector<8x1xf32>
    %148 = vector.broadcast %147 : vector<8x1xf32> to vector<8x128xf32>
    %149 = arith.addf %145, %148 : vector<8x128xf32>
    %150 = arith.addf %91, %149 : vector<8x128xf32>
    %cst_79 = arith.constant 0.000000e+00 : f32
    %151 = vector.broadcast %cst_79 : f32 to vector<8x128xf32>
    %152 = arith.maximumf %150, %151 : vector<8x128xf32>
    %c1_i32_80 = arith.constant 1 : i32
    %153 = tpu.dynamic_rotate %152 by %c1_i32_80 dim 1 : vector<8x128xf32>, i32 -> vector<8x128xf32>
    %cst_81 = arith.constant 0.000000e+00 : f32
    %154 = vector.shape_cast %11 : vector<1x128xi1> to vector<1x128xi1>
    %155 = vector.broadcast %154 : vector<1x128xi1> to vector<8x128xi1>
    %156 = vector.broadcast %cst_81 : f32 to vector<8x128xf32>
    %157 = arith.select %155, %153, %156 : vector<8x128xi1>, vector<8x128xf32>
    %c13 = arith.constant 13 : index
    %c0_82 = arith.constant 0 : index
    %c0_83 = arith.constant 0 : index
    %158 = vector.load %arg2[%c13, %c0_82, %c0_83] : memref<20x8x8xbf16, #tpu.memory_space<vmem>>, vector<1x8x8xbf16>
    %159 = vector.shape_cast %158 : vector<1x8x8xbf16> to vector<8x8xbf16>
    %160 = arith.truncf %157 : vector<8x128xf32> to vector<8x128xbf16>
    %cst_84 = arith.constant dense<0.000000e+00> : vector<8x128xf32>
    %161 = tpu.matmul %159, %160, %cst_84 {dimension_numbers = #tpu.dot_dimension_numbers<[1], [0], [0], [1], [0, 0, 1, 1], [], []>} : vector<8x8xbf16>, vector<8x128xbf16>, vector<8x128xf32> -> vector<8x128xf32>
    %c14 = arith.constant 14 : index
    %c0_85 = arith.constant 0 : index
    %c0_86 = arith.constant 0 : index
    %162 = vector.load %arg2[%c14, %c0_85, %c0_86] : memref<20x8x8xbf16, #tpu.memory_space<vmem>>, vector<1x8x8xbf16>
    %163 = vector.shape_cast %162 : vector<1x8x8xbf16> to vector<8x8xbf16>
    %164 = arith.truncf %152 : vector<8x128xf32> to vector<8x128xbf16>
    %cst_87 = arith.constant dense<0.000000e+00> : vector<8x128xf32>
    %165 = tpu.matmul %163, %164, %cst_87 {dimension_numbers = #tpu.dot_dimension_numbers<[1], [0], [0], [1], [0, 0, 1, 1], [], []>} : vector<8x8xbf16>, vector<8x128xbf16>, vector<8x128xf32> -> vector<8x128xf32>
    %166 = arith.addf %161, %165 : vector<8x128xf32>
    %c127_i32_88 = arith.constant 127 : i32
    %167 = tpu.dynamic_rotate %152 by %c127_i32_88 dim 1 : vector<8x128xf32>, i32 -> vector<8x128xf32>
    %cst_89 = arith.constant 0.000000e+00 : f32
    %168 = vector.shape_cast %20 : vector<1x128xi1> to vector<1x128xi1>
    %169 = vector.broadcast %168 : vector<1x128xi1> to vector<8x128xi1>
    %170 = vector.broadcast %cst_89 : f32 to vector<8x128xf32>
    %171 = arith.select %169, %167, %170 : vector<8x128xi1>, vector<8x128xf32>
    %c15 = arith.constant 15 : index
    %c0_90 = arith.constant 0 : index
    %c0_91 = arith.constant 0 : index
    %172 = vector.load %arg2[%c15, %c0_90, %c0_91] : memref<20x8x8xbf16, #tpu.memory_space<vmem>>, vector<1x8x8xbf16>
    %173 = vector.shape_cast %172 : vector<1x8x8xbf16> to vector<8x8xbf16>
    %174 = arith.truncf %171 : vector<8x128xf32> to vector<8x128xbf16>
    %cst_92 = arith.constant dense<0.000000e+00> : vector<8x128xf32>
    %175 = tpu.matmul %173, %174, %cst_92 {dimension_numbers = #tpu.dot_dimension_numbers<[1], [0], [0], [1], [0, 0, 1, 1], [], []>} : vector<8x8xbf16>, vector<8x128xbf16>, vector<8x128xf32> -> vector<8x128xf32>
    %176 = arith.addf %166, %175 : vector<8x128xf32>
    %c5_93 = arith.constant 5 : index
    %c0_94 = arith.constant 0 : index
    %c0_95 = arith.constant 0 : index
    %177 = vector.load %arg3[%c5_93, %c0_94, %c0_95] : memref<8x8x1xf32, #tpu.memory_space<vmem>>, vector<1x8x1xf32>
    %178 = vector.shape_cast %177 : vector<1x8x1xf32> to vector<8x1xf32>
    %179 = vector.broadcast %178 : vector<8x1xf32> to vector<8x128xf32>
    %180 = arith.addf %176, %179 : vector<8x128xf32>
    %cst_96 = arith.constant 0.000000e+00 : f32
    %181 = vector.broadcast %cst_96 : f32 to vector<8x128xf32>
    %182 = arith.maximumf %180, %181 : vector<8x128xf32>
    %c1_i32_97 = arith.constant 1 : i32
    %183 = tpu.dynamic_rotate %182 by %c1_i32_97 dim 1 : vector<8x128xf32>, i32 -> vector<8x128xf32>
    %cst_98 = arith.constant 0.000000e+00 : f32
    %184 = vector.shape_cast %11 : vector<1x128xi1> to vector<1x128xi1>
    %185 = vector.broadcast %184 : vector<1x128xi1> to vector<8x128xi1>
    %186 = vector.broadcast %cst_98 : f32 to vector<8x128xf32>
    %187 = arith.select %185, %183, %186 : vector<8x128xi1>, vector<8x128xf32>
    %c16 = arith.constant 16 : index
    %c0_99 = arith.constant 0 : index
    %c0_100 = arith.constant 0 : index
    %188 = vector.load %arg2[%c16, %c0_99, %c0_100] : memref<20x8x8xbf16, #tpu.memory_space<vmem>>, vector<1x8x8xbf16>
    %189 = vector.shape_cast %188 : vector<1x8x8xbf16> to vector<8x8xbf16>
    %190 = arith.truncf %187 : vector<8x128xf32> to vector<8x128xbf16>
    %cst_101 = arith.constant dense<0.000000e+00> : vector<8x128xf32>
    %191 = tpu.matmul %189, %190, %cst_101 {dimension_numbers = #tpu.dot_dimension_numbers<[1], [0], [0], [1], [0, 0, 1, 1], [], []>} : vector<8x8xbf16>, vector<8x128xbf16>, vector<8x128xf32> -> vector<8x128xf32>
    %c17 = arith.constant 17 : index
    %c0_102 = arith.constant 0 : index
    %c0_103 = arith.constant 0 : index
    %192 = vector.load %arg2[%c17, %c0_102, %c0_103] : memref<20x8x8xbf16, #tpu.memory_space<vmem>>, vector<1x8x8xbf16>
    %193 = vector.shape_cast %192 : vector<1x8x8xbf16> to vector<8x8xbf16>
    %194 = arith.truncf %182 : vector<8x128xf32> to vector<8x128xbf16>
    %cst_104 = arith.constant dense<0.000000e+00> : vector<8x128xf32>
    %195 = tpu.matmul %193, %194, %cst_104 {dimension_numbers = #tpu.dot_dimension_numbers<[1], [0], [0], [1], [0, 0, 1, 1], [], []>} : vector<8x8xbf16>, vector<8x128xbf16>, vector<8x128xf32> -> vector<8x128xf32>
    %196 = arith.addf %191, %195 : vector<8x128xf32>
    %c127_i32_105 = arith.constant 127 : i32
    %197 = tpu.dynamic_rotate %182 by %c127_i32_105 dim 1 : vector<8x128xf32>, i32 -> vector<8x128xf32>
    %cst_106 = arith.constant 0.000000e+00 : f32
    %198 = vector.shape_cast %20 : vector<1x128xi1> to vector<1x128xi1>
    %199 = vector.broadcast %198 : vector<1x128xi1> to vector<8x128xi1>
    %200 = vector.broadcast %cst_106 : f32 to vector<8x128xf32>
    %201 = arith.select %199, %197, %200 : vector<8x128xi1>, vector<8x128xf32>
    %c18 = arith.constant 18 : index
    %c0_107 = arith.constant 0 : index
    %c0_108 = arith.constant 0 : index
    %202 = vector.load %arg2[%c18, %c0_107, %c0_108] : memref<20x8x8xbf16, #tpu.memory_space<vmem>>, vector<1x8x8xbf16>
    %203 = vector.shape_cast %202 : vector<1x8x8xbf16> to vector<8x8xbf16>
    %204 = arith.truncf %201 : vector<8x128xf32> to vector<8x128xbf16>
    %cst_109 = arith.constant dense<0.000000e+00> : vector<8x128xf32>
    %205 = tpu.matmul %203, %204, %cst_109 {dimension_numbers = #tpu.dot_dimension_numbers<[1], [0], [0], [1], [0, 0, 1, 1], [], []>} : vector<8x8xbf16>, vector<8x128xbf16>, vector<8x128xf32> -> vector<8x128xf32>
    %206 = arith.addf %196, %205 : vector<8x128xf32>
    %c6_110 = arith.constant 6 : index
    %c0_111 = arith.constant 0 : index
    %c0_112 = arith.constant 0 : index
    %207 = vector.load %arg3[%c6_110, %c0_111, %c0_112] : memref<8x8x1xf32, #tpu.memory_space<vmem>>, vector<1x8x1xf32>
    %208 = vector.shape_cast %207 : vector<1x8x1xf32> to vector<8x1xf32>
    %209 = vector.broadcast %208 : vector<8x1xf32> to vector<8x128xf32>
    %210 = arith.addf %206, %209 : vector<8x128xf32>
    %211 = arith.addf %152, %210 : vector<8x128xf32>
    %cst_113 = arith.constant 0.000000e+00 : f32
    %212 = vector.broadcast %cst_113 : f32 to vector<8x128xf32>
    %213 = arith.maximumf %211, %212 : vector<8x128xf32>
    %cst_114 = arith.constant 0xFF800000 : f32
    %214 = vector.shape_cast %2 : vector<1x128xi1> to vector<1x128xi1>
    %215 = vector.broadcast %214 : vector<1x128xi1> to vector<8x128xi1>
    %216 = vector.broadcast %cst_114 : f32 to vector<8x128xf32>
    %217 = arith.select %215, %213, %216 : vector<8x128xi1>, vector<8x128xf32>
    %cst_115 = arith.constant dense<0xFF800000> : vector<8xf32>
    %218 = vector.multi_reduction <maximumf>, %217, %cst_115 [1] : vector<8x128xf32> to vector<8xf32>
    %219 = vector.shape_cast %218 : vector<8xf32> to vector<8x1xf32>
    %c19 = arith.constant 19 : index
    %c0_116 = arith.constant 0 : index
    %c0_117 = arith.constant 0 : index
    %220 = vector.load %arg2[%c19, %c0_116, %c0_117] : memref<20x8x8xbf16, #tpu.memory_space<vmem>>, vector<1x8x8xbf16>
    %221 = vector.shape_cast %220 : vector<1x8x8xbf16> to vector<8x8xbf16>
    %222 = arith.truncf %219 : vector<8x1xf32> to vector<8x1xbf16>
    %cst_118 = arith.constant dense<0.000000e+00> : vector<8x1xf32>
    %223 = tpu.matmul %221, %222, %cst_118 {dimension_numbers = #tpu.dot_dimension_numbers<[1], [0], [0], [1], [0, 0, 1, 1], [], []>} : vector<8x8xbf16>, vector<8x1xbf16>, vector<8x1xf32> -> vector<8x1xf32>
    %c7_119 = arith.constant 7 : index
    %c0_120 = arith.constant 0 : index
    %c0_121 = arith.constant 0 : index
    %224 = vector.load %arg3[%c7_119, %c0_120, %c0_121] : memref<8x8x1xf32, #tpu.memory_space<vmem>>, vector<1x8x1xf32>
    %225 = vector.shape_cast %224 : vector<1x8x1xf32> to vector<8x1xf32>
    %226 = arith.addf %223, %225 : vector<8x1xf32>
    %227 = vector.extract_strided_slice %226 {offsets = [0, 0], sizes = [1, 1], strides = [1, 1]} : vector<8x1xf32> to vector<1x1xf32>
    %228 = arith.negf %227 : vector<1x1xf32>
    %229 = math.exp %228 : vector<1x1xf32>
    %cst_122 = arith.constant 1.000000e+00 : f32
    %230 = vector.broadcast %cst_122 : f32 to vector<1x1xf32>
    %231 = arith.addf %230, %229 : vector<1x1xf32>
    %232 = arith.divf %230, %231 : vector<1x1xf32>
    %c0_123 = arith.constant 0 : index
    %c0_124 = arith.constant 0 : index
    %c0_125 = arith.constant 0 : index
    %233 = vector.load %arg4[%c0_123, %c0_124, %c0_125] : memref<1x1x1xf32, #tpu.memory_space<vmem>>, vector<1x1x1xf32>
    %234 = vector.shape_cast %233 : vector<1x1x1xf32> to vector<1x1xf32>
    %235 = vector.shape_cast %232 : vector<1x1xf32> to vector<1x1x1xf32>
    tpu.vector_store %arg4[%c0_123, %c0_124, %c0_125], %235 {strides = array<i32>} : memref<1x1x1xf32, #tpu.memory_space<vmem>>, vector<1x1x1xf32>,
    return
  }
  func.func @transform_0(%arg0: i32) -> (i32, i32, i32) {
    %c0_i32 = arith.constant 0 : i32
    %c0_i32_0 = arith.constant 0 : i32
    %c0_i32_1 = arith.constant 0 : i32
    return %arg0, %c0_i32, %c0_i32_0 : i32, i32, i32
  }
  func.func @transform_1(%arg0: i32) -> (i32, i32, i32) {
    %c0_i32 = arith.constant 0 : i32
    %c0_i32_0 = arith.constant 0 : i32
    %c0_i32_1 = arith.constant 0 : i32
    %c0_i32_2 = arith.constant 0 : i32
    return %c0_i32, %c0_i32_0, %c0_i32_1 : i32, i32, i32
  }
  func.func @transform_2(%arg0: i32) -> (i32, i32, i32) {
    %c0_i32 = arith.constant 0 : i32
    %c0_i32_0 = arith.constant 0 : i32
    %c0_i32_1 = arith.constant 0 : i32
    %c0_i32_2 = arith.constant 0 : i32
    return %c0_i32, %c0_i32_0, %c0_i32_1 : i32, i32, i32
  }
  func.func @transform_3(%arg0: i32) -> (i32, i32, i32) {
    %c0_i32 = arith.constant 0 : i32
    %c0_i32_0 = arith.constant 0 : i32
    %c0_i32_1 = arith.constant 0 : i32
    return %arg0, %c0_i32, %c0_i32_0 : i32, i32, i32
  }
}

</mosaic_0001>

<llo_original>
// kernel: tpu_custom_call.1
$region0: #{tpu_custom_call.1}
  #allocation0 [shape = 'u32[]', space=smem, size = 0x4, offset = 0x4, fixed_abs, tag = 'smem constant byte address 0x4 - core index']
  #allocation1 [shape = 'u32[144,128]{1,0:T(1,128)}', space=vmem, size = 0x12000, scoped, tag = 'internal scratch']
  %s0 = inlined_call_operand.vmem [shape: f32[2,8,128], index: 0, kind: input, shape index: {}]
  %s1 = inlined_call_operand.vmem [shape: bf16[20,8,8], index: 1, kind: input, shape index: {}]
  %s2 = inlined_call_operand.vmem [shape: f32[8,8,1], index: 2, kind: input, shape index: {}]
  %s3 = inlined_call_operand.vmem [shape: f32[2,1,1], index: 3, kind: output, shape index: {}]
  %s4 = sld [smem:[#allocation0]]
  $region45: #{tpu_custom_call.1} parent=0
    _
  %s6 = ssub.s32 1, %s4
  %s7 = scalar_select 0, %s6, %s4
  loop: start=0, step=1, limit=4
  $region2: #{tpu_custom_call.1} parent=0 // loop_pre_header
    _
  $region3: #{tpu_custom_call.1} parent=0 // loop_header
    %s9 = sphi 0, %s13
    %p10 = scmp.ge.s32.totalorder %s9, 4
    %s19 = sphi 0, %s21
    %s22 = sphi 0, %s19
    %s23 = sphi 0, %s22
    %s39 = sphi 0, %s23
    %s43 = sphi 0, %s43
    %s45 = sphi 0, %s43
    %s46 = sphi 0, %s45
    %s60 = sphi 0, %s46
    %s64 = sphi 0, %s64
    %s66 = sphi 0, %s64
    %s67 = sphi 0, %s66
    %s81 = sphi 0, %s67
    %s87 = sphi 0, %s89
    %s90 = sphi 0, %s87
    %s91 = sphi 0, %s90
    %s107 = sphi 0, %s91
  $region4: #{tpu_custom_call.1} parent=0 // loop_header_branch
    %12 = sbr.rel (%p10) target = $region8
  $region5: #{tpu_custom_call.1} parent=0 // loop_body
    %s14 = ssub.s32 %s9, 1
    %s15 = ssub.s32 %s9, 2
    %s16 = sadd.s32 %s9, 1
    %s17 = ssub.s32 %s9, %s16
    %p18 = scmp.eq.s32.totalorder %s17, 0
    %s20 = sadd.s32 %s19, 1
    %s21 = scalar_select %p18, %s19, %s20
    %p24 = pneg %p18
    %p25 = scmp.eq.s32.totalorder %s9, 1
    %p26 = por %p24, %p25
    %p27 = scmp.ne.s32.totalorder %s19, %s22
    %p28 = scmp.eq.s32.totalorder %s9, 0
    %p29 = por %p27, %p28
    %p30 = scmp.ne.s32.totalorder %s19, %s22
    %p31 = scmp.eq.s32.totalorder %s14, 1
    %p32 = por %p30, %p31
    %p33 = scmp.ne.s32.totalorder %s22, %s23
    %p34 = scmp.eq.s32.totalorder %s14, 0
    %p35 = por %p33, %p34
    %p36 = scmp.ne.s32.totalorder %s22, %s23
    %p37 = scmp.eq.s32.totalorder %s15, 1
    %p38 = por %p36, %p37
    %p40 = scmp.ne.s32.totalorder %s23, %s39
    %p41 = scmp.eq.s32.totalorder %s15, 0
    %p42 = por %p40, %p41
    %s44 = sadd.s32 %s43, 1
    %p47 = scmp.eq.s32.totalorder %s9, 1
    %p48 = scmp.ne.s32.totalorder %s43, %s45
    %p49 = scmp.eq.s32.totalorder %s9, 0
    %p50 = por %p48, %p49
    %p51 = scmp.ne.s32.totalorder %s43, %s45
    %p52 = scmp.eq.s32.totalorder %s14, 1
    %p53 = por %p51, %p52
    %p54 = scmp.ne.s32.totalorder %s45, %s46
    %p55 = scmp.eq.s32.totalorder %s14, 0
    %p56 = por %p54, %p55
    %p57 = scmp.ne.s32.totalorder %s45, %s46
    %p58 = scmp.eq.s32.totalorder %s15, 1
    %p59 = por %p57, %p58
    %p61 = scmp.ne.s32.totalorder %s46, %s60
    %p62 = scmp.eq.s32.totalorder %s15, 0
    %p63 = por %p61, %p62
    %s65 = sadd.s32 %s64, 1
    %p68 = scmp.eq.s32.totalorder %s9, 1
    %p69 = scmp.ne.s32.totalorder %s64, %s66
    %p70 = scmp.eq.s32.totalorder %s9, 0
    %p71 = por %p69, %p70
    %p72 = scmp.ne.s32.totalorder %s64, %s66
    %p73 = scmp.eq.s32.totalorder %s14, 1
    %p74 = por %p72, %p73
    %p75 = scmp.ne.s32.totalorder %s66, %s67
    %p76 = scmp.eq.s32.totalorder %s14, 0
    %p77 = por %p75, %p76
    %p78 = scmp.ne.s32.totalorder %s66, %s67
    %p79 = scmp.eq.s32.totalorder %s15, 1
    %p80 = por %p78, %p79
    %p82 = scmp.ne.s32.totalorder %s67, %s81
    %p83 = scmp.eq.s32.totalorder %s15, 0
    %p84 = por %p82, %p83
    %s85 = ssub.s32 %s9, %s16
    %p86 = scmp.eq.s32.totalorder %s85, 0
    %s88 = sadd.s32 %s87, 1
    %s89 = scalar_select %p86, %s87, %s88
    %p92 = pneg %p86
    %p93 = scmp.eq.s32.totalorder %s9, 1
    %p94 = por %p92, %p93
    %p95 = scmp.ne.s32.totalorder %s87, %s90
    %p96 = scmp.eq.s32.totalorder %s9, 0
    %p97 = por %p95, %p96
    %p98 = scmp.ne.s32.totalorder %s87, %s90
    %p99 = scmp.eq.s32.totalorder %s14, 1
    %p100 = por %p98, %p99
    %p101 = scmp.ne.s32.totalorder %s90, %s91
    %p102 = scmp.eq.s32.totalorder %s14, 0
    %p103 = por %p101, %p102
    %p104 = scmp.ne.s32.totalorder %s90, %s91
    %p105 = scmp.eq.s32.totalorder %s15, 1
    %p106 = por %p104, %p105
    %p108 = scmp.ne.s32.totalorder %s91, %s107
    %p109 = scmp.eq.s32.totalorder %s15, 0
    %p110 = por %p108, %p109
    %p111 = scmp.le.s32.totalorder 1, %s9
    %p112 = scmp.lt.s32.totalorder %s9, 3
    %p113 = pnand %p111, %p112
    %p114 = pneg %p113
    // Predicated region
    $region9: #{tpu_custom_call.1} parent=5 // pred_check
      _
    $region10: #{tpu_custom_call.1} parent=5 // pred_check_branch
      %116 = sbr.rel (%p113) target = $region12
    $region11: #{tpu_custom_call.1} parent=5 // pred_region
      %s117 = ssub.s32 %s9, 1
      // Predicated region
      $region13: #{tpu_custom_call.1} parent=11 // pred_check
        %p118 = pneg %p56
      $region14: #{tpu_custom_call.1} parent=11 // pred_check_branch
        %120 = sbr.rel (%p118) target = $region16
      $region15: #{tpu_custom_call.1} parent=11 // pred_region
        _
      $region16: #{tpu_custom_call.1} parent=11 // pred_fallthru
        _
      // Predicated region
      $region17: #{tpu_custom_call.1} parent=11 // pred_check
        %p121 = pneg %p77
      $region18: #{tpu_custom_call.1} parent=11 // pred_check_branch
        %123 = sbr.rel (%p121) target = $region20
      $region19: #{tpu_custom_call.1} parent=11 // pred_region
        _
      $region20: #{tpu_custom_call.1} parent=11 // pred_fallthru
        _
    $region12: #{tpu_custom_call.1} parent=5 // pred_fallthru
      _
    %p124 = scmp.lt.s32.totalorder %s9, 2
    // Predicated region
    $region21: #{tpu_custom_call.1} parent=5 // pred_check
      %p125 = pneg %p124
    $region22: #{tpu_custom_call.1} parent=5 // pred_check_branch
      %127 = sbr.rel (%p125) target = $region24
    $region23: #{tpu_custom_call.1} parent=5 // pred_region
      // Predicated region
      $region25: #{tpu_custom_call.1} parent=23 // pred_check
        %p128 = pneg %p29
      $region26: #{tpu_custom_call.1} parent=23 // pred_check_branch
        %130 = sbr.rel (%p128) target = $region28
      $region27: #{tpu_custom_call.1} parent=23 // pred_region
        %p131 = scmp.lt.s32.totalorder %s9, 1
        %s132 = scalar_select %p131, %s9, 1
        %s133 = smul.addr %s132, 8
        %s134 = scalar_lea.vmem %s0, %s133
      $region28: #{tpu_custom_call.1} parent=23 // pred_fallthru
        _
    $region24: #{tpu_custom_call.1} parent=5 // pred_fallthru
      _
    %p135 = scmp.le.s32.totalorder 1, %s9
    %p136 = scmp.lt.s32.totalorder %s9, 3
    %p137 = pnand %p135, %p136
    %p138 = pneg %p137
    // Predicated region
    $region29: #{tpu_custom_call.1} parent=5 // pred_check
      _
    $region30: #{tpu_custom_call.1} parent=5 // pred_check_branch
      %140 = sbr.rel (%p137) target = $region32
    $region31: #{tpu_custom_call.1} parent=5 // pred_region
      %s141 = ssub.s32 %s9, 1
      %p142 = scmp.lt.s32.totalorder %s14, 1
      %s143 = scalar_select %p142, %s14, 1
      %s144 = smul.addr %s143, 8
      %s145 = scalar_lea.vmem %s0, %s144
      %p146 = pneg %p35
      %p147 = pneg %p32
      %p148 = pneg %p56
      %p149 = pneg %p53
      %p150 = pneg %p77
      %p151 = pneg %p74
      %p152 = pneg %p103
      %p153 = pneg %p100
      %p154 = scmp.lt.s32.totalorder %s14, 1
      %s155 = scalar_select %p154, %s14, 1
      %s156 = scalar_lea.vmem %s3, %s155
      %p157 = scmp.lt.s32.totalorder %s14, 1
      %s158 = scalar_select %p157, %s14, 1
      %s159 = smul.addr %s158, 8
      %s160 = scalar_lea.vmem %s0, %s159
      %p161 = scmp.lt.s32.totalorder %s14, 1
      %s162 = scalar_select %p161, %s14, 1
      %s163 = scalar_lea.vmem %s3, %s162
      %v165 = vlaneseq
      %v166 = vand.u32 %v165, 127
      %vm167 = vcmp.lt.s32.totalorder %v166, 16
      %v168 = vadd.s32 %v166, 4294967295
      %vm169 = vcmp.ge.s32.totalorder %v168, 0
      %vm170 = vcmp.lt.s32.totalorder %v168, 16
      %vm171 = vmand %vm169, %vm170
      %v172 = vadd.s32 %v166, 1
      %vm173 = vcmp.ge.s32.totalorder %v172, 0
      %vm174 = vcmp.lt.s32.totalorder %v172, 16
      %vm175 = vmand %vm173, %vm174
      %v176 = vld [vmem:[%s160] sm:$0xff]
      %177 = vrot.lane.b32.xlu0 %v176, 1
      %v178 = vpop.permute.xlu0 %177
      %v179 = vsel %vm171, 1, 0
      %vm180 = vcmp.eq.s32.totalorder %v179, 1
      %v181 = vsel %vm180, %v178, 0.0
      %v182 = vld [vmem:[%s1] sm:$0xf]
      %v183 = vpack.c.bf16 %v181, %v181
      %s184 = scalar_lea.vmem %s1, 4
      %v185 = vld [vmem:[%s184] sm:$0xf]
      %v186 = vpack.c.bf16 %v176, %v176
      %vm187 = vcmask 64512
      %v189 = vsel %vm187, %v185, 0
      %vm191 = vcmask 1043456
      %v193 = vsel %vm191, %v186, 0
      %195 = vmatprep.subr.bf16.mxu0 0
      %196 = vmatpush1.bf16.msra.mxu0 %v193
      %197 = vmatprep.subr.bf16.mxu0 0
      %198 = vmatpush1.bf16.msra.mxu0 0
      %199 = vmatprep.subr.bf16.mxu0 0
      %200 = vmatpush1.bf16.msra.mxu0 0
      %201 = vmatprep.subr.bf16.mxu0 0
      %202 = vmatpush1.bf16.msra.mxu0 0
      %203 = vmatprep.subr.bf16.mxu0 0
      %204 = vmatpush1.bf16.msra.mxu0 0
      %205 = vmatprep.subr.bf16.mxu0 0
      %206 = vmatpush1.bf16.msra.mxu0 0
      %207 = vmatprep.subr.bf16.mxu0 0
      %208 = vmatpush1.bf16.msra.mxu0 0
      %209 = vmatprep.subr.bf16.mxu0 0
      %210 = vmatpush1.bf16.msra.mxu0 0
      %211 = vmatprep.subr.bf16.mxu0 0
      %212 = vmatpush1.bf16.msra.mxu0 0
      %213 = vmatprep.subr.bf16.mxu0 0
      %214 = vmatpush1.bf16.msra.mxu0 0
      %215 = vmatprep.subr.bf16.mxu0 0
      %216 = vmatpush1.bf16.msra.mxu0 0
      %217 = vmatprep.subr.bf16.mxu0 0
      %218 = vmatpush1.bf16.msra.mxu0 0
      %219 = vmatprep.subr.bf16.mxu0 0
      %220 = vmatpush1.bf16.msra.mxu0 0
      %221 = vmatprep.subr.bf16.mxu0 0
      %222 = vmatpush1.bf16.msra.mxu0 0
      %223 = vmatprep.subr.bf16.mxu0 0
      %224 = vmatpush1.bf16.msra.mxu0 0
      %225 = vmatprep.subr.bf16.mxu0 0
      %226 = vmatpush1.bf16.msra.mxu0 0
      %227 = vmatprep.mubr.bf16.mxu0 0
      %228 = vmatmul.mubr.bf16.gmra.mrb[0].mxu0 %v189
      %v229 = vpop.f32.mrb[0].mxu0
      %v230 = vadd.f32 0.0, %v229
      %v231 = vpop.f32.mrb[0].mxu0
      %v232 = vpop.f32.mrb[0].mxu0
      %v233 = vpop.f32.mrb[0].mxu0
      %234 = vdwg.mxu0
      %v236 = vsel %vm187, %v182, 0
      %v239 = vsel %vm191, %v183, 0
      %241 = vmatprep.subr.bf16.mxu0 0
      %242 = vmatpush1.bf16.msra.mxu0 %v239
      %243 = vmatprep.subr.bf16.mxu0 0
      %244 = vmatpush1.bf16.msra.mxu0 0
      %245 = vmatprep.subr.bf16.mxu0 0
      %246 = vmatpush1.bf16.msra.mxu0 0
      %247 = vmatprep.subr.bf16.mxu0 0
      %248 = vmatpush1.bf16.msra.mxu0 0
      %249 = vmatprep.subr.bf16.mxu0 0
      %250 = vmatpush1.bf16.msra.mxu0 0
      %251 = vmatprep.subr.bf16.mxu0 0
      %252 = vmatpush1.bf16.msra.mxu0 0
      %253 = vmatprep.subr.bf16.mxu0 0
      %254 = vmatpush1.bf16.msra.mxu0 0
      %255 = vmatprep.subr.bf16.mxu0 0
      %256 = vmatpush1.bf16.msra.mxu0 0
      %257 = vmatprep.subr.bf16.mxu0 0
      %258 = vmatpush1.bf16.msra.mxu0 0
      %259 = vmatprep.subr.bf16.mxu0 0
      %260 = vmatpush1.bf16.msra.mxu0 0
      %261 = vmatprep.subr.bf16.mxu0 0
      %262 = vmatpush1.bf16.msra.mxu0 0
      %263 = vmatprep.subr.bf16.mxu0 0
      %264 = vmatpush1.bf16.msra.mxu0 0
      %265 = vmatprep.subr.bf16.mxu0 0
      %266 = vmatpush1.bf16.msra.mxu0 0
      %267 = vmatprep.subr.bf16.mxu0 0
      %268 = vmatpush1.bf16.msra.mxu0 0
      %269 = vmatprep.subr.bf16.mxu0 0
      %270 = vmatpush1.bf16.msra.mxu0 0
      %271 = vmatprep.subr.bf16.mxu0 0
      %272 = vmatpush1.bf16.msra.mxu0 0
      %273 = vmatprep.mubr.bf16.mxu0 0
      %274 = vmatmul.mubr.bf16.gmra.mrb[0].mxu0 %v236
      %v275 = vpop.f32.mrb[0].mxu0
      %v276 = vadd.f32 %v230, %v275
      %v277 = vpop.f32.mrb[0].mxu0
      %v278 = vpop.f32.mrb[0].mxu0
      %v279 = vpop.f32.mrb[0].mxu0
      %280 = vdwg.mxu0
      %281 = vrot.lane.b32.xlu0 %v176, 127
      %v282 = vpop.permute.xlu0 %281
      %v283 = vsel %vm175, 1, 0
      %vm284 = vcmp.eq.s32.totalorder %v283, 1
      %v285 = vsel %vm284, %v282, 0.0
      %s286 = scalar_lea.vmem %s1, 8
      %v287 = vld [vmem:[%s286] sm:$0xf]
      %v288 = vpack.c.bf16 %v285, %v285
      %v290 = vsel %vm187, %v287, 0
      %v293 = vsel %vm191, %v288, 0
      %295 = vmatprep.subr.bf16.mxu0 0
      %296 = vmatpush1.bf16.msra.mxu0 %v293
      %297 = vmatprep.subr.bf16.mxu0 0
      %298 = vmatpush1.bf16.msra.mxu0 0
      %299 = vmatprep.subr.bf16.mxu0 0
      %300 = vmatpush1.bf16.msra.mxu0 0
      %301 = vmatprep.subr.bf16.mxu0 0
      %302 = vmatpush1.bf16.msra.mxu0 0
      %303 = vmatprep.subr.bf16.mxu0 0
      %304 = vmatpush1.bf16.msra.mxu0 0
      %305 = vmatprep.subr.bf16.mxu0 0
      %306 = vmatpush1.bf16.msra.mxu0 0
      %307 = vmatprep.subr.bf16.mxu0 0
      %308 = vmatpush1.bf16.msra.mxu0 0
      %309 = vmatprep.subr.bf16.mxu0 0
      %310 = vmatpush1.bf16.msra.mxu0 0
      %311 = vmatprep.subr.bf16.mxu0 0
      %312 = vmatpush1.bf16.msra.mxu0 0
      %313 = vmatprep.subr.bf16.mxu0 0
      %314 = vmatpush1.bf16.msra.mxu0 0
      %315 = vmatprep.subr.bf16.mxu0 0
      %316 = vmatpush1.bf16.msra.mxu0 0
      %317 = vmatprep.subr.bf16.mxu0 0
      %318 = vmatpush1.bf16.msra.mxu0 0
      %319 = vmatprep.subr.bf16.mxu0 0
      %320 = vmatpush1.bf16.msra.mxu0 0
      %321 = vmatprep.subr.bf16.mxu0 0
      %322 = vmatpush1.bf16.msra.mxu0 0
      %323 = vmatprep.subr.bf16.mxu0 0
      %324 = vmatpush1.bf16.msra.mxu0 0
      %325 = vmatprep.subr.bf16.mxu0 0
      %326 = vmatpush1.bf16.msra.mxu0 0
      %327 = vmatprep.mubr.bf16.mxu0 0
      %328 = vmatmul.mubr.bf16.gmra.mrb[0].mxu0 %v290
      %v329 = vpop.f32.mrb[0].mxu0
      %v330 = vadd.f32 0.0, %v329
      %v331 = vpop.f32.mrb[0].mxu0
      %v332 = vpop.f32.mrb[0].mxu0
      %v333 = vpop.f32.mrb[0].mxu0
      %334 = vdwg.mxu0
      %v335 = vadd.f32 %v276, %v330
      %v336 = vld [vmem:[%s2] sm:$0xff]
      %338 = vset.pattern.permute.xlu0 0
      %339 = vperm.xlu0 %338, %v336
      %v340 = vpop.permute.xlu0 %339
      %v342 = vadd.f32 %v335, %v340
      %v343 = vmax.f32 %v342, 0.0
      %344 = vrot.lane.b32.xlu0 %v343, 1
      %v345 = vpop.permute.xlu0 %344
      %v346 = vsel %vm180, %v345, 0.0
      %s347 = scalar_lea.vmem %s1, 12
      %v348 = vld [vmem:[%s347] sm:$0xf]
      %v349 = vpack.c.bf16 %v346, %v346
      %s350 = scalar_lea.vmem %s1, 16
      %v351 = vld [vmem:[%s350] sm:$0xf]
      %v352 = vpack.c.bf16 %v343, %v343
      %v354 = vsel %vm187, %v351, 0
      %v357 = vsel %vm191, %v352, 0
      %359 = vmatprep.subr.bf16.mxu0 0
      %360 = vmatpush1.bf16.msra.mxu0 %v357
      %361 = vmatprep.subr.bf16.mxu0 0
      %362 = vmatpush1.bf16.msra.mxu0 0
      %363 = vmatprep.subr.bf16.mxu0 0
      %364 = vmatpush1.bf16.msra.mxu0 0
      %365 = vmatprep.subr.bf16.mxu0 0
      %366 = vmatpush1.bf16.msra.mxu0 0
      %367 = vmatprep.subr.bf16.mxu0 0
      %368 = vmatpush1.bf16.msra.mxu0 0
      %369 = vmatprep.subr.bf16.mxu0 0
      %370 = vmatpush1.bf16.msra.mxu0 0
      %371 = vmatprep.subr.bf16.mxu0 0
      %372 = vmatpush1.bf16.msra.mxu0 0
      %373 = vmatprep.subr.bf16.mxu0 0
      %374 = vmatpush1.bf16.msra.mxu0 0
      %375 = vmatprep.subr.bf16.mxu0 0
      %376 = vmatpush1.bf16.msra.mxu0 0
      %377 = vmatprep.subr.bf16.mxu0 0
      %378 = vmatpush1.bf16.msra.mxu0 0
      %379 = vmatprep.subr.bf16.mxu0 0
      %380 = vmatpush1.bf16.msra.mxu0 0
      %381 = vmatprep.subr.bf16.mxu0 0
      %382 = vmatpush1.bf16.msra.mxu0 0
      %383 = vmatprep.subr.bf16.mxu0 0
      %384 = vmatpush1.bf16.msra.mxu0 0
      %385 = vmatprep.subr.bf16.mxu0 0
      %386 = vmatpush1.bf16.msra.mxu0 0
      %387 = vmatprep.subr.bf16.mxu0 0
      %388 = vmatpush1.bf16.msra.mxu0 0
      %389 = vmatprep.subr.bf16.mxu0 0
      %390 = vmatpush1.bf16.msra.mxu0 0
      %391 = vmatprep.mubr.bf16.mxu0 0
      %392 = vmatmul.mubr.bf16.gmra.mrb[0].mxu0 %v354
      %v393 = vpop.f32.mrb[0].mxu0
      %v394 = vadd.f32 0.0, %v393
      %v395 = vpop.f32.mrb[0].mxu0
      %v396 = vpop.f32.mrb[0].mxu0
      %v397 = vpop.f32.mrb[0].mxu0
      %398 = vdwg.mxu0
      %v400 = vsel %vm187, %v348, 0
      %v403 = vsel %vm191, %v349, 0
      %405 = vmatprep.subr.bf16.mxu0 0
      %406 = vmatpush1.bf16.msra.mxu0 %v403
      %407 = vmatprep.subr.bf16.mxu0 0
      %408 = vmatpush1.bf16.msra.mxu0 0
      %409 = vmatprep.subr.bf16.mxu0 0
      %410 = vmatpush1.bf16.msra.mxu0 0
      %411 = vmatprep.subr.bf16.mxu0 0
      %412 = vmatpush1.bf16.msra.mxu0 0
      %413 = vmatprep.subr.bf16.mxu0 0
      %414 = vmatpush1.bf16.msra.mxu0 0
      %415 = vmatprep.subr.bf16.mxu0 0
      %416 = vmatpush1.bf16.msra.mxu0 0
      %417 = vmatprep.subr.bf16.mxu0 0
      %418 = vmatpush1.bf16.msra.mxu0 0
      %419 = vmatprep.subr.bf16.mxu0 0
      %420 = vmatpush1.bf16.msra.mxu0 0
      %421 = vmatprep.subr.bf16.mxu0 0
      %422 = vmatpush1.bf16.msra.mxu0 0
      %423 = vmatprep.subr.bf16.mxu0 0
      %424 = vmatpush1.bf16.msra.mxu0 0
      %425 = vmatprep.subr.bf16.mxu0 0
      %426 = vmatpush1.bf16.msra.mxu0 0
      %427 = vmatprep.subr.bf16.mxu0 0
      %428 = vmatpush1.bf16.msra.mxu0 0
      %429 = vmatprep.subr.bf16.mxu0 0
      %430 = vmatpush1.bf16.msra.mxu0 0
      %431 = vmatprep.subr.bf16.mxu0 0
      %432 = vmatpush1.bf16.msra.mxu0 0
      %433 = vmatprep.subr.bf16.mxu0 0
      %434 = vmatpush1.bf16.msra.mxu0 0
      %435 = vmatprep.subr.bf16.mxu0 0
      %436 = vmatpush1.bf16.msra.mxu0 0
      %437 = vmatprep.mubr.bf16.mxu0 0
      %438 = vmatmul.mubr.bf16.gmra.mrb[0].mxu0 %v400
      %v439 = vpop.f32.mrb[0].mxu0
      %v440 = vadd.f32 %v394, %v439
      %v441 = vpop.f32.mrb[0].mxu0
      %v442 = vpop.f32.mrb[0].mxu0
      %v443 = vpop.f32.mrb[0].mxu0
      %444 = vdwg.mxu0
      %445 = vrot.lane.b32.xlu0 %v343, 127
      %v446 = vpop.permute.xlu0 %445
      %v447 = vsel %vm284, %v446, 0.0
      %s448 = scalar_lea.vmem %s1, 20
      %v449 = vld [vmem:[%s448] sm:$0xf]
      %v450 = vpack.c.bf16 %v447, %v447
      %v452 = vsel %vm187, %v449, 0
      %v455 = vsel %vm191, %v450, 0
      %457 = vmatprep.subr.bf16.mxu0 0
      %458 = vmatpush1.bf16.msra.mxu0 %v455
      %459 = vmatprep.subr.bf16.mxu0 0
      %460 = vmatpush1.bf16.msra.mxu0 0
      %461 = vmatprep.subr.bf16.mxu0 0
      %462 = vmatpush1.bf16.msra.mxu0 0
      %463 = vmatprep.subr.bf16.mxu0 0
      %464 = vmatpush1.bf16.msra.mxu0 0
      %465 = vmatprep.subr.bf16.mxu0 0
      %466 = vmatpush1.bf16.msra.mxu0 0
      %467 = vmatprep.subr.bf16.mxu0 0
      %468 = vmatpush1.bf16.msra.mxu0 0
      %469 = vmatprep.subr.bf16.mxu0 0
      %470 = vmatpush1.bf16.msra.mxu0 0
      %471 = vmatprep.subr.bf16.mxu0 0
      %472 = vmatpush1.bf16.msra.mxu0 0
      %473 = vmatprep.subr.bf16.mxu0 0
      %474 = vmatpush1.bf16.msra.mxu0 0
      %475 = vmatprep.subr.bf16.mxu0 0
      %476 = vmatpush1.bf16.msra.mxu0 0
      %477 = vmatprep.subr.bf16.mxu0 0
      %478 = vmatpush1.bf16.msra.mxu0 0
      %479 = vmatprep.subr.bf16.mxu0 0
      %480 = vmatpush1.bf16.msra.mxu0 0
      %481 = vmatprep.subr.bf16.mxu0 0
      %482 = vmatpush1.bf16.msra.mxu0 0
      %483 = vmatprep.subr.bf16.mxu0 0
      %484 = vmatpush1.bf16.msra.mxu0 0
      %485 = vmatprep.subr.bf16.mxu0 0
      %486 = vmatpush1.bf16.msra.mxu0 0
      %487 = vmatprep.subr.bf16.mxu0 0
      %488 = vmatpush1.bf16.msra.mxu0 0
      %489 = vmatprep.mubr.bf16.mxu0 0
      %490 = vmatmul.mubr.bf16.gmra.mrb[0].mxu0 %v452
      %v491 = vpop.f32.mrb[0].mxu0
      %v492 = vadd.f32 0.0, %v491
      %v493 = vpop.f32.mrb[0].mxu0
      %v494 = vpop.f32.mrb[0].mxu0
      %v495 = vpop.f32.mrb[0].mxu0
      %496 = vdwg.mxu0
      %v497 = vadd.f32 %v440, %v492
      %s498 = scalar_lea.vmem %s2, 8
      %v499 = vld [vmem:[%s498] sm:$0xff]
      %501 = vset.pattern.permute.xlu0 0
      %502 = vperm.xlu0 %501, %v499
      %v503 = vpop.permute.xlu0 %502
      %v505 = vadd.f32 %v497, %v503
      %s506 = scalar_lea.vmem %s1, 24
      %v507 = vld [vmem:[%s506] sm:$0xf]
      %s508 = scalar_lea.vmem %s2, 16
      %v509 = vld [vmem:[%s508] sm:$0xff]
      %511 = vset.pattern.permute.xlu0 0
      %512 = vperm.xlu0 %511, %v509
      %v513 = vpop.permute.xlu0 %512
      %v516 = vsel %vm187, %v507, 0
      %518 = vmatprep.subr.bf16.mxu0 0
      %519 = vmatpush1.bf16.msra.mxu0 %v193
      %520 = vmatprep.subr.bf16.mxu0 0
      %521 = vmatpush1.bf16.msra.mxu0 0
      %522 = vmatprep.subr.bf16.mxu0 0
      %523 = vmatpush1.bf16.msra.mxu0 0
      %524 = vmatprep.subr.bf16.mxu0 0
      %525 = vmatpush1.bf16.msra.mxu0 0
      %526 = vmatprep.subr.bf16.mxu0 0
      %527 = vmatpush1.bf16.msra.mxu0 0
      %528 = vmatprep.subr.bf16.mxu0 0
      %529 = vmatpush1.bf16.msra.mxu0 0
      %530 = vmatprep.subr.bf16.mxu0 0
      %531 = vmatpush1.bf16.msra.mxu0 0
      %532 = vmatprep.subr.bf16.mxu0 0
      %533 = vmatpush1.bf16.msra.mxu0 0
      %534 = vmatprep.subr.bf16.mxu0 0
      %535 = vmatpush1.bf16.msra.mxu0 0
      %536 = vmatprep.subr.bf16.mxu0 0
      %537 = vmatpush1.bf16.msra.mxu0 0
      %538 = vmatprep.subr.bf16.mxu0 0
      %539 = vmatpush1.bf16.msra.mxu0 0
      %540 = vmatprep.subr.bf16.mxu0 0
      %541 = vmatpush1.bf16.msra.mxu0 0
      %542 = vmatprep.subr.bf16.mxu0 0
      %543 = vmatpush1.bf16.msra.mxu0 0
      %544 = vmatprep.subr.bf16.mxu0 0
      %545 = vmatpush1.bf16.msra.mxu0 0
      %546 = vmatprep.subr.bf16.mxu0 0
      %547 = vmatpush1.bf16.msra.mxu0 0
      %548 = vmatprep.subr.bf16.mxu0 0
      %549 = vmatpush1.bf16.msra.mxu0 0
      %550 = vmatprep.mubr.bf16.mxu0 0
      %551 = vmatmul.mubr.bf16.gmra.mrb[0].mxu0 %v516
      %v552 = vpop.f32.mrb[0].mxu0
      %v553 = vadd.f32 %v513, %v552
      %v554 = vpop.f32.mrb[0].mxu0
      %v555 = vpop.f32.mrb[0].mxu0
      %v556 = vpop.f32.mrb[0].mxu0
      %557 = vdwg.mxu0
      %v558 = vadd.f32 %v553, %v505
      %v559 = vmax.f32 %v558, 0.0
      %560 = vrot.lane.b32.xlu0 %v559, 1
      %v561 = vpop.permute.xlu0 %560
      %v562 = vsel %vm180, %v561, 0.0
      %s563 = scalar_lea.vmem %s1, 28
      %v564 = vld [vmem:[%s563] sm:$0xf]
      %v565 = vpack.c.bf16 %v562, %v562
      %s566 = scalar_lea.vmem %s1, 32
      %v567 = vld [vmem:[%s566] sm:$0xf]
      %v568 = vpack.c.bf16 %v559, %v559
      %v570 = vsel %vm187, %v567, 0
      %v573 = vsel %vm191, %v568, 0
      %575 = vmatprep.subr.bf16.mxu0 0
      %576 = vmatpush1.bf16.msra.mxu0 %v573
      %577 = vmatprep.subr.bf16.mxu0 0
      %578 = vmatpush1.bf16.msra.mxu0 0
      %579 = vmatprep.subr.bf16.mxu0 0
      %580 = vmatpush1.bf16.msra.mxu0 0
      %581 = vmatprep.subr.bf16.mxu0 0
      %582 = vmatpush1.bf16.msra.mxu0 0
      %583 = vmatprep.subr.bf16.mxu0 0
      %584 = vmatpush1.bf16.msra.mxu0 0
      %585 = vmatprep.subr.bf16.mxu0 0
      %586 = vmatpush1.bf16.msra.mxu0 0
      %587 = vmatprep.subr.bf16.mxu0 0
      %588 = vmatpush1.bf16.msra.mxu0 0
      %589 = vmatprep.subr.bf16.mxu0 0
      %590 = vmatpush1.bf16.msra.mxu0 0
      %591 = vmatprep.subr.bf16.mxu0 0
      %592 = vmatpush1.bf16.msra.mxu0 0
      %593 = vmatprep.subr.bf16.mxu0 0
      %594 = vmatpush1.bf16.msra.mxu0 0
      %595 = vmatprep.subr.bf16.mxu0 0
      %596 = vmatpush1.bf16.msra.mxu0 0
      %597 = vmatprep.subr.bf16.mxu0 0
      %598 = vmatpush1.bf16.msra.mxu0 0
      %599 = vmatprep.subr.bf16.mxu0 0
      %600 = vmatpush1.bf16.msra.mxu0 0
      %601 = vmatprep.subr.bf16.mxu0 0
      %602 = vmatpush1.bf16.msra.mxu0 0
      %603 = vmatprep.subr.bf16.mxu0 0
      %604 = vmatpush1.bf16.msra.mxu0 0
      %605 = vmatprep.subr.bf16.mxu0 0
      %606 = vmatpush1.bf16.msra.mxu0 0
      %607 = vmatprep.mubr.bf16.mxu0 0
      %608 = vmatmul.mubr.bf16.gmra.mrb[0].mxu0 %v570
      %v609 = vpop.f32.mrb[0].mxu0
      %v610 = vadd.f32 0.0, %v609
      %v611 = vpop.f32.mrb[0].mxu0
      %v612 = vpop.f32.mrb[0].mxu0
      %v613 = vpop.f32.mrb[0].mxu0
      %614 = vdwg.mxu0
      %v616 = vsel %vm187, %v564, 0
      %v619 = vsel %vm191, %v565, 0
      %621 = vmatprep.subr.bf16.mxu0 0
      %622 = vmatpush1.bf16.msra.mxu0 %v619
      %623 = vmatprep.subr.bf16.mxu0 0
      %624 = vmatpush1.bf16.msra.mxu0 0
      %625 = vmatprep.subr.bf16.mxu0 0
      %626 = vmatpush1.bf16.msra.mxu0 0
      %627 = vmatprep.subr.bf16.mxu0 0
      %628 = vmatpush1.bf16.msra.mxu0 0
      %629 = vmatprep.subr.bf16.mxu0 0
      %630 = vmatpush1.bf16.msra.mxu0 0
      %631 = vmatprep.subr.bf16.mxu0 0
      %632 = vmatpush1.bf16.msra.mxu0 0
      %633 = vmatprep.subr.bf16.mxu0 0
      %634 = vmatpush1.bf16.msra.mxu0 0
      %635 = vmatprep.subr.bf16.mxu0 0
      %636 = vmatpush1.bf16.msra.mxu0 0
      %637 = vmatprep.subr.bf16.mxu0 0
      %638 = vmatpush1.bf16.msra.mxu0 0
      %639 = vmatprep.subr.bf16.mxu0 0
      %640 = vmatpush1.bf16.msra.mxu0 0
      %641 = vmatprep.subr.bf16.mxu0 0
      %642 = vmatpush1.bf16.msra.mxu0 0
      %643 = vmatprep.subr.bf16.mxu0 0
      %644 = vmatpush1.bf16.msra.mxu0 0
      %645 = vmatprep.subr.bf16.mxu0 0
      %646 = vmatpush1.bf16.msra.mxu0 0
      %647 = vmatprep.subr.bf16.mxu0 0
      %648 = vmatpush1.bf16.msra.mxu0 0
      %649 = vmatprep.subr.bf16.mxu0 0
      %650 = vmatpush1.bf16.msra.mxu0 0
      %651 = vmatprep.subr.bf16.mxu0 0
      %652 = vmatpush1.bf16.msra.mxu0 0
      %653 = vmatprep.mubr.bf16.mxu0 0
      %654 = vmatmul.mubr.bf16.gmra.mrb[0].mxu0 %v616
      %v655 = vpop.f32.mrb[0].mxu0
      %v656 = vadd.f32 %v610, %v655
      %v657 = vpop.f32.mrb[0].mxu0
      %v658 = vpop.f32.mrb[0].mxu0
      %v659 = vpop.f32.mrb[0].mxu0
      %660 = vdwg.mxu0
      %661 = vrot.lane.b32.xlu0 %v559, 127
      %v662 = vpop.permute.xlu0 %661
      %v663 = vsel %vm284, %v662, 0.0
      %s664 = scalar_lea.vmem %s1, 36
      %v665 = vld [vmem:[%s664] sm:$0xf]
      %v666 = vpack.c.bf16 %v663, %v663
      %v668 = vsel %vm187, %v665, 0
      %v671 = vsel %vm191, %v666, 0
      %673 = vmatprep.subr.bf16.mxu0 0
      %674 = vmatpush1.bf16.msra.mxu0 %v671
      %675 = vmatprep.subr.bf16.mxu0 0
      %676 = vmatpush1.bf16.msra.mxu0 0
      %677 = vmatprep.subr.bf16.mxu0 0
      %678 = vmatpush1.bf16.msra.mxu0 0
      %679 = vmatprep.subr.bf16.mxu0 0
      %680 = vmatpush1.bf16.msra.mxu0 0
      %681 = vmatprep.subr.bf16.mxu0 0
      %682 = vmatpush1.bf16.msra.mxu0 0
      %683 = vmatprep.subr.bf16.mxu0 0
      %684 = vmatpush1.bf16.msra.mxu0 0
      %685 = vmatprep.subr.bf16.mxu0 0
      %686 = vmatpush1.bf16.msra.mxu0 0
      %687 = vmatprep.subr.bf16.mxu0 0
      %688 = vmatpush1.bf16.msra.mxu0 0
      %689 = vmatprep.subr.bf16.mxu0 0
      %690 = vmatpush1.bf16.msra.mxu0 0
      %691 = vmatprep.subr.bf16.mxu0 0
      %692 = vmatpush1.bf16.msra.mxu0 0
      %693 = vmatprep.subr.bf16.mxu0 0
      %694 = vmatpush1.bf16.msra.mxu0 0
      %695 = vmatprep.subr.bf16.mxu0 0
      %696 = vmatpush1.bf16.msra.mxu0 0
      %697 = vmatprep.subr.bf16.mxu0 0
      %698 = vmatpush1.bf16.msra.mxu0 0
      %699 = vmatprep.subr.bf16.mxu0 0
      %700 = vmatpush1.bf16.msra.mxu0 0
      %701 = vmatprep.subr.bf16.mxu0 0
      %702 = vmatpush1.bf16.msra.mxu0 0
      %703 = vmatprep.subr.bf16.mxu0 0
      %704 = vmatpush1.bf16.msra.mxu0 0
      %705 = vmatprep.mubr.bf16.mxu0 0
      %706 = vmatmul.mubr.bf16.gmra.mrb[0].mxu0 %v668
      %v707 = vpop.f32.mrb[0].mxu0
      %v708 = vadd.f32 0.0, %v707
      %v709 = vpop.f32.mrb[0].mxu0
      %v710 = vpop.f32.mrb[0].mxu0
      %v711 = vpop.f32.mrb[0].mxu0
      %712 = vdwg.mxu0
      %v713 = vadd.f32 %v656, %v708
      %s714 = scalar_lea.vmem %s2, 24
      %v715 = vld [vmem:[%s714] sm:$0xff]
      %717 = vset.pattern.permute.xlu0 0
      %718 = vperm.xlu0 %717, %v715
      %v719 = vpop.permute.xlu0 %718
      %v721 = vadd.f32 %v713, %v719
      %v722 = vmax.f32 %v721, 0.0
      %723 = vrot.lane.b32.xlu0 %v722, 1
      %v724 = vpop.permute.xlu0 %723
      %v725 = vsel %vm180, %v724, 0.0
      %s726 = scalar_lea.vmem %s1, 40
      %v727 = vld [vmem:[%s726] sm:$0xf]
      %v728 = vpack.c.bf16 %v725, %v725
      %s729 = scalar_lea.vmem %s1, 44
      %v730 = vld [vmem:[%s729] sm:$0xf]
      %v731 = vpack.c.bf16 %v722, %v722
      %v733 = vsel %vm187, %v730, 0
      %v736 = vsel %vm191, %v731, 0
      %738 = vmatprep.subr.bf16.mxu0 0
      %739 = vmatpush1.bf16.msra.mxu0 %v736
      %740 = vmatprep.subr.bf16.mxu0 0
      %741 = vmatpush1.bf16.msra.mxu0 0
      %742 = vmatprep.subr.bf16.mxu0 0
      %743 = vmatpush1.bf16.msra.mxu0 0
      %744 = vmatprep.subr.bf16.mxu0 0
      %745 = vmatpush1.bf16.msra.mxu0 0
      %746 = vmatprep.subr.bf16.mxu0 0
      %747 = vmatpush1.bf16.msra.mxu0 0
      %748 = vmatprep.subr.bf16.mxu0 0
      %749 = vmatpush1.bf16.msra.mxu0 0
      %750 = vmatprep.subr.bf16.mxu0 0
      %751 = vmatpush1.bf16.msra.mxu0 0
      %752 = vmatprep.subr.bf16.mxu0 0
      %753 = vmatpush1.bf16.msra.mxu0 0
      %754 = vmatprep.subr.bf16.mxu0 0
      %755 = vmatpush1.bf16.msra.mxu0 0
      %756 = vmatprep.subr.bf16.mxu0 0
      %757 = vmatpush1.bf16.msra.mxu0 0
      %758 = vmatprep.subr.bf16.mxu0 0
      %759 = vmatpush1.bf16.msra.mxu0 0
      %760 = vmatprep.subr.bf16.mxu0 0
      %761 = vmatpush1.bf16.msra.mxu0 0
      %762 = vmatprep.subr.bf16.mxu0 0
      %763 = vmatpush1.bf16.msra.mxu0 0
      %764 = vmatprep.subr.bf16.mxu0 0
      %765 = vmatpush1.bf16.msra.mxu0 0
      %766 = vmatprep.subr.bf16.mxu0 0
      %767 = vmatpush1.bf16.msra.mxu0 0
      %768 = vmatprep.subr.bf16.mxu0 0
      %769 = vmatpush1.bf16.msra.mxu0 0
      %770 = vmatprep.mubr.bf16.mxu0 0
      %771 = vmatmul.mubr.bf16.gmra.mrb[0].mxu0 %v733
      %v772 = vpop.f32.mrb[0].mxu0
      %v773 = vadd.f32 0.0, %v772
      %v774 = vpop.f32.mrb[0].mxu0
      %v775 = vpop.f32.mrb[0].mxu0
      %v776 = vpop.f32.mrb[0].mxu0
      %777 = vdwg.mxu0
      %v779 = vsel %vm187, %v727, 0
      %v782 = vsel %vm191, %v728, 0
      %784 = vmatprep.subr.bf16.mxu0 0
      %785 = vmatpush1.bf16.msra.mxu0 %v782
      %786 = vmatprep.subr.bf16.mxu0 0
      %787 = vmatpush1.bf16.msra.mxu0 0
      %788 = vmatprep.subr.bf16.mxu0 0
      %789 = vmatpush1.bf16.msra.mxu0 0
      %790 = vmatprep.subr.bf16.mxu0 0
      %791 = vmatpush1.bf16.msra.mxu0 0
      %792 = vmatprep.subr.bf16.mxu0 0
      %793 = vmatpush1.bf16.msra.mxu0 0
      %794 = vmatprep.subr.bf16.mxu0 0
      %795 = vmatpush1.bf16.msra.mxu0 0
      %796 = vmatprep.subr.bf16.mxu0 0
      %797 = vmatpush1.bf16.msra.mxu0 0
      %798 = vmatprep.subr.bf16.mxu0 0
      %799 = vmatpush1.bf16.msra.mxu0 0
      %800 = vmatprep.subr.bf16.mxu0 0
      %801 = vmatpush1.bf16.msra.mxu0 0
      %802 = vmatprep.subr.bf16.mxu0 0
      %803 = vmatpush1.bf16.msra.mxu0 0
      %804 = vmatprep.subr.bf16.mxu0 0
      %805 = vmatpush1.bf16.msra.mxu0 0
      %806 = vmatprep.subr.bf16.mxu0 0
      %807 = vmatpush1.bf16.msra.mxu0 0
      %808 = vmatprep.subr.bf16.mxu0 0
      %809 = vmatpush1.bf16.msra.mxu0 0
      %810 = vmatprep.subr.bf16.mxu0 0
      %811 = vmatpush1.bf16.msra.mxu0 0
      %812 = vmatprep.subr.bf16.mxu0 0
      %813 = vmatpush1.bf16.msra.mxu0 0
      %814 = vmatprep.subr.bf16.mxu0 0
      %815 = vmatpush1.bf16.msra.mxu0 0
      %816 = vmatprep.mubr.bf16.mxu0 0
      %817 = vmatmul.mubr.bf16.gmra.mrb[0].mxu0 %v779
      %v818 = vpop.f32.mrb[0].mxu0
      %v819 = vadd.f32 %v773, %v818
      %v820 = vpop.f32.mrb[0].mxu0
      %v821 = vpop.f32.mrb[0].mxu0
      %v822 = vpop.f32.mrb[0].mxu0
      %823 = vdwg.mxu0
      %824 = vrot.lane.b32.xlu0 %v722, 127
      %v825 = vpop.permute.xlu0 %824
      %v826 = vsel %vm284, %v825, 0.0
      %s827 = scalar_lea.vmem %s1, 48
      %v828 = vld [vmem:[%s827] sm:$0xf]
      %v829 = vpack.c.bf16 %v826, %v826
      %v831 = vsel %vm187, %v828, 0
      %v834 = vsel %vm191, %v829, 0
      %836 = vmatprep.subr.bf16.mxu0 0
      %837 = vmatpush1.bf16.msra.mxu0 %v834
      %838 = vmatprep.subr.bf16.mxu0 0
      %839 = vmatpush1.bf16.msra.mxu0 0
      %840 = vmatprep.subr.bf16.mxu0 0
      %841 = vmatpush1.bf16.msra.mxu0 0
      %842 = vmatprep.subr.bf16.mxu0 0
      %843 = vmatpush1.bf16.msra.mxu0 0
      %844 = vmatprep.subr.bf16.mxu0 0
      %845 = vmatpush1.bf16.msra.mxu0 0
      %846 = vmatprep.subr.bf16.mxu0 0
      %847 = vmatpush1.bf16.msra.mxu0 0
      %848 = vmatprep.subr.bf16.mxu0 0
      %849 = vmatpush1.bf16.msra.mxu0 0
      %850 = vmatprep.subr.bf16.mxu0 0
      %851 = vmatpush1.bf16.msra.mxu0 0
      %852 = vmatprep.subr.bf16.mxu0 0
      %853 = vmatpush1.bf16.msra.mxu0 0
      %854 = vmatprep.subr.bf16.mxu0 0
      %855 = vmatpush1.bf16.msra.mxu0 0
      %856 = vmatprep.subr.bf16.mxu0 0
      %857 = vmatpush1.bf16.msra.mxu0 0
      %858 = vmatprep.subr.bf16.mxu0 0
      %859 = vmatpush1.bf16.msra.mxu0 0
      %860 = vmatprep.subr.bf16.mxu0 0
      %861 = vmatpush1.bf16.msra.mxu0 0
      %862 = vmatprep.subr.bf16.mxu0 0
      %863 = vmatpush1.bf16.msra.mxu0 0
      %864 = vmatprep.subr.bf16.mxu0 0
      %865 = vmatpush1.bf16.msra.mxu0 0
      %866 = vmatprep.subr.bf16.mxu0 0
      %867 = vmatpush1.bf16.msra.mxu0 0
      %868 = vmatprep.mubr.bf16.mxu0 0
      %869 = vmatmul.mubr.bf16.gmra.mrb[0].mxu0 %v831
      %v870 = vpop.f32.mrb[0].mxu0
      %v871 = vadd.f32 0.0, %v870
      %v872 = vpop.f32.mrb[0].mxu0
      %v873 = vpop.f32.mrb[0].mxu0
      %v874 = vpop.f32.mrb[0].mxu0
      %875 = vdwg.mxu0
      %v876 = vadd.f32 %v819, %v871
      %s877 = scalar_lea.vmem %s2, 32
      %v878 = vld [vmem:[%s877] sm:$0xff]
      %880 = vset.pattern.permute.xlu0 0
      %881 = vperm.xlu0 %880, %v878
      %v882 = vpop.permute.xlu0 %881
      %v884 = vadd.f32 %v876, %v882
      %v885 = vadd.f32 %v559, %v884
      %v886 = vmax.f32 %v885, 0.0
      %887 = vrot.lane.b32.xlu0 %v886, 1
      %v888 = vpop.permute.xlu0 %887
      %v889 = vsel %vm180, %v888, 0.0
      %s890 = scalar_lea.vmem %s1, 52
      %v891 = vld [vmem:[%s890] sm:$0xf]
      %v892 = vpack.c.bf16 %v889, %v889
      %s893 = scalar_lea.vmem %s1, 56
      %v894 = vld [vmem:[%s893] sm:$0xf]
      %v895 = vpack.c.bf16 %v886, %v886
      %v897 = vsel %vm187, %v894, 0
      %v900 = vsel %vm191, %v895, 0
      %902 = vmatprep.subr.bf16.mxu0 0
      %903 = vmatpush1.bf16.msra.mxu0 %v900
      %904 = vmatprep.subr.bf16.mxu0 0
      %905 = vmatpush1.bf16.msra.mxu0 0
      %906 = vmatprep.subr.bf16.mxu0 0
      %907 = vmatpush1.bf16.msra.mxu0 0
      %908 = vmatprep.subr.bf16.mxu0 0
      %909 = vmatpush1.bf16.msra.mxu0 0
      %910 = vmatprep.subr.bf16.mxu0 0
      %911 = vmatpush1.bf16.msra.mxu0 0
      %912 = vmatprep.subr.bf16.mxu0 0
      %913 = vmatpush1.bf16.msra.mxu0 0
      %914 = vmatprep.subr.bf16.mxu0 0
      %915 = vmatpush1.bf16.msra.mxu0 0
      %916 = vmatprep.subr.bf16.mxu0 0
      %917 = vmatpush1.bf16.msra.mxu0 0
      %918 = vmatprep.subr.bf16.mxu0 0
      %919 = vmatpush1.bf16.msra.mxu0 0
      %920 = vmatprep.subr.bf16.mxu0 0
      %921 = vmatpush1.bf16.msra.mxu0 0
      %922 = vmatprep.subr.bf16.mxu0 0
      %923 = vmatpush1.bf16.msra.mxu0 0
      %924 = vmatprep.subr.bf16.mxu0 0
      %925 = vmatpush1.bf16.msra.mxu0 0
      %926 = vmatprep.subr.bf16.mxu0 0
      %927 = vmatpush1.bf16.msra.mxu0 0
      %928 = vmatprep.subr.bf16.mxu0 0
      %929 = vmatpush1.bf16.msra.mxu0 0
      %930 = vmatprep.subr.bf16.mxu0 0
      %931 = vmatpush1.bf16.msra.mxu0 0
      %932 = vmatprep.subr.bf16.mxu0 0
      %933 = vmatpush1.bf16.msra.mxu0 0
      %934 = vmatprep.mubr.bf16.mxu0 0
      %935 = vmatmul.mubr.bf16.gmra.mrb[0].mxu0 %v897
      %v936 = vpop.f32.mrb[0].mxu0
      %v937 = vadd.f32 0.0, %v936
      %v938 = vpop.f32.mrb[0].mxu0
      %v939 = vpop.f32.mrb[0].mxu0
      %v940 = vpop.f32.mrb[0].mxu0
      %941 = vdwg.mxu0
      %v943 = vsel %vm187, %v891, 0
      %v946 = vsel %vm191, %v892, 0
      %948 = vmatprep.subr.bf16.mxu0 0
      %949 = vmatpush1.bf16.msra.mxu0 %v946
      %950 = vmatprep.subr.bf16.mxu0 0
      %951 = vmatpush1.bf16.msra.mxu0 0
      %952 = vmatprep.subr.bf16.mxu0 0
      %953 = vmatpush1.bf16.msra.mxu0 0
      %954 = vmatprep.subr.bf16.mxu0 0
      %955 = vmatpush1.bf16.msra.mxu0 0
      %956 = vmatprep.subr.bf16.mxu0 0
      %957 = vmatpush1.bf16.msra.mxu0 0
      %958 = vmatprep.subr.bf16.mxu0 0
      %959 = vmatpush1.bf16.msra.mxu0 0
      %960 = vmatprep.subr.bf16.mxu0 0
      %961 = vmatpush1.bf16.msra.mxu0 0
      %962 = vmatprep.subr.bf16.mxu0 0
      %963 = vmatpush1.bf16.msra.mxu0 0
      %964 = vmatprep.subr.bf16.mxu0 0
      %965 = vmatpush1.bf16.msra.mxu0 0
      %966 = vmatprep.subr.bf16.mxu0 0
      %967 = vmatpush1.bf16.msra.mxu0 0
      %968 = vmatprep.subr.bf16.mxu0 0
      %969 = vmatpush1.bf16.msra.mxu0 0
      %970 = vmatprep.subr.bf16.mxu0 0
      %971 = vmatpush1.bf16.msra.mxu0 0
      %972 = vmatprep.subr.bf16.mxu0 0
      %973 = vmatpush1.bf16.msra.mxu0 0
      %974 = vmatprep.subr.bf16.mxu0 0
      %975 = vmatpush1.bf16.msra.mxu0 0
      %976 = vmatprep.subr.bf16.mxu0 0
      %977 = vmatpush1.bf16.msra.mxu0 0
      %978 = vmatprep.subr.bf16.mxu0 0
      %979 = vmatpush1.bf16.msra.mxu0 0
      %980 = vmatprep.mubr.bf16.mxu0 0
      %981 = vmatmul.mubr.bf16.gmra.mrb[0].mxu0 %v943
      %v982 = vpop.f32.mrb[0].mxu0
      %v983 = vadd.f32 %v937, %v982
      %v984 = vpop.f32.mrb[0].mxu0
      %v985 = vpop.f32.mrb[0].mxu0
      %v986 = vpop.f32.mrb[0].mxu0
      %987 = vdwg.mxu0
      %988 = vrot.lane.b32.xlu0 %v886, 127
      %v989 = vpop.permute.xlu0 %988
      %v990 = vsel %vm284, %v989, 0.0
      %s991 = scalar_lea.vmem %s1, 60
      %v992 = vld [vmem:[%s991] sm:$0xf]
      %v993 = vpack.c.bf16 %v990, %v990
      %v995 = vsel %vm187, %v992, 0
      %v998 = vsel %vm191, %v993, 0
      %1000 = vmatprep.subr.bf16.mxu0 0
      %1001 = vmatpush1.bf16.msra.mxu0 %v998
      %1002 = vmatprep.subr.bf16.mxu0 0
      %1003 = vmatpush1.bf16.msra.mxu0 0
      %1004 = vmatprep.subr.bf16.mxu0 0
      %1005 = vmatpush1.bf16.msra.mxu0 0
      %1006 = vmatprep.subr.bf16.mxu0 0
      %1007 = vmatpush1.bf16.msra.mxu0 0
      %1008 = vmatprep.subr.bf16.mxu0 0
      %1009 = vmatpush1.bf16.msra.mxu0 0
      %1010 = vmatprep.subr.bf16.mxu0 0
      %1011 = vmatpush1.bf16.msra.mxu0 0
      %1012 = vmatprep.subr.bf16.mxu0 0
      %1013 = vmatpush1.bf16.msra.mxu0 0
      %1014 = vmatprep.subr.bf16.mxu0 0
      %1015 = vmatpush1.bf16.msra.mxu0 0
      %1016 = vmatprep.subr.bf16.mxu0 0
      %1017 = vmatpush1.bf16.msra.mxu0 0
      %1018 = vmatprep.subr.bf16.mxu0 0
      %1019 = vmatpush1.bf16.msra.mxu0 0
      %1020 = vmatprep.subr.bf16.mxu0 0
      %1021 = vmatpush1.bf16.msra.mxu0 0
      %1022 = vmatprep.subr.bf16.mxu0 0
      %1023 = vmatpush1.bf16.msra.mxu0 0
      %1024 = vmatprep.subr.bf16.mxu0 0
      %1025 = vmatpush1.bf16.msra.mxu0 0
      %1026 = vmatprep.subr.bf16.mxu0 0
      %1027 = vmatpush1.bf16.msra.mxu0 0
      %1028 = vmatprep.subr.bf16.mxu0 0
      %1029 = vmatpush1.bf16.msra.mxu0 0
      %1030 = vmatprep.subr.bf16.mxu0 0
      %1031 = vmatpush1.bf16.msra.mxu0 0
      %1032 = vmatprep.mubr.bf16.mxu0 0
      %1033 = vmatmul.mubr.bf16.gmra.mrb[0].mxu0 %v995
      %v1034 = vpop.f32.mrb[0].mxu0
      %v1035 = vadd.f32 0.0, %v1034
      %v1036 = vpop.f32.mrb[0].mxu0
      %v1037 = vpop.f32.mrb[0].mxu0
      %v1038 = vpop.f32.mrb[0].mxu0
      %1039 = vdwg.mxu0
      %v1040 = vadd.f32 %v983, %v1035
      %s1041 = scalar_lea.vmem %s2, 40
      %v1042 = vld [vmem:[%s1041] sm:$0xff]
      %1044 = vset.pattern.permute.xlu0 0
      %1045 = vperm.xlu0 %1044, %v1042
      %v1046 = vpop.permute.xlu0 %1045
      %v1048 = vadd.f32 %v1040, %v1046
      %v1049 = vmax.f32 %v1048, 0.0
      %1050 = vrot.lane.b32.xlu0 %v1049, 1
      %v1051 = vpop.permute.xlu0 %1050
      %v1052 = vsel %vm180, %v1051, 0.0
      %s1053 = scalar_lea.vmem %s1, 64
      %v1054 = vld [vmem:[%s1053] sm:$0xf]
      %v1055 = vpack.c.bf16 %v1052, %v1052
      %s1056 = scalar_lea.vmem %s1, 68
      %v1057 = vld [vmem:[%s1056] sm:$0xf]
      %v1058 = vpack.c.bf16 %v1049, %v1049
      %v1060 = vsel %vm187, %v1057, 0
      %v1063 = vsel %vm191, %v1058, 0
      %1065 = vmatprep.subr.bf16.mxu0 0
      %1066 = vmatpush1.bf16.msra.mxu0 %v1063
      %1067 = vmatprep.subr.bf16.mxu0 0
      %1068 = vmatpush1.bf16.msra.mxu0 0
      %1069 = vmatprep.subr.bf16.mxu0 0
      %1070 = vmatpush1.bf16.msra.mxu0 0
      %1071 = vmatprep.subr.bf16.mxu0 0
      %1072 = vmatpush1.bf16.msra.mxu0 0
      %1073 = vmatprep.subr.bf16.mxu0 0
      %1074 = vmatpush1.bf16.msra.mxu0 0
      %1075 = vmatprep.subr.bf16.mxu0 0
      %1076 = vmatpush1.bf16.msra.mxu0 0
      %1077 = vmatprep.subr.bf16.mxu0 0
      %1078 = vmatpush1.bf16.msra.mxu0 0
      %1079 = vmatprep.subr.bf16.mxu0 0
      %1080 = vmatpush1.bf16.msra.mxu0 0
      %1081 = vmatprep.subr.bf16.mxu0 0
      %1082 = vmatpush1.bf16.msra.mxu0 0
      %1083 = vmatprep.subr.bf16.mxu0 0
      %1084 = vmatpush1.bf16.msra.mxu0 0
      %1085 = vmatprep.subr.bf16.mxu0 0
      %1086 = vmatpush1.bf16.msra.mxu0 0
      %1087 = vmatprep.subr.bf16.mxu0 0
      %1088 = vmatpush1.bf16.msra.mxu0 0
      %1089 = vmatprep.subr.bf16.mxu0 0
      %1090 = vmatpush1.bf16.msra.mxu0 0
      %1091 = vmatprep.subr.bf16.mxu0 0
      %1092 = vmatpush1.bf16.msra.mxu0 0
      %1093 = vmatprep.subr.bf16.mxu0 0
      %1094 = vmatpush1.bf16.msra.mxu0 0
      %1095 = vmatprep.subr.bf16.mxu0 0
      %1096 = vmatpush1.bf16.msra.mxu0 0
      %1097 = vmatprep.mubr.bf16.mxu0 0
      %1098 = vmatmul.mubr.bf16.gmra.mrb[0].mxu0 %v1060
      %v1099 = vpop.f32.mrb[0].mxu0
      %v1100 = vadd.f32 0.0, %v1099
      %v1101 = vpop.f32.mrb[0].mxu0
      %v1102 = vpop.f32.mrb[0].mxu0
      %v1103 = vpop.f32.mrb[0].mxu0
      %1104 = vdwg.mxu0
      %v1106 = vsel %vm187, %v1054, 0
      %v1109 = vsel %vm191, %v1055, 0
      %1111 = vmatprep.subr.bf16.mxu0 0
      %1112 = vmatpush1.bf16.msra.mxu0 %v1109
      %1113 = vmatprep.subr.bf16.mxu0 0
      %1114 = vmatpush1.bf16.msra.mxu0 0
      %1115 = vmatprep.subr.bf16.mxu0 0
      %1116 = vmatpush1.bf16.msra.mxu0 0
      %1117 = vmatprep.subr.bf16.mxu0 0
      %1118 = vmatpush1.bf16.msra.mxu0 0
      %1119 = vmatprep.subr.bf16.mxu0 0
      %1120 = vmatpush1.bf16.msra.mxu0 0
      %1121 = vmatprep.subr.bf16.mxu0 0
      %1122 = vmatpush1.bf16.msra.mxu0 0
      %1123 = vmatprep.subr.bf16.mxu0 0
      %1124 = vmatpush1.bf16.msra.mxu0 0
      %1125 = vmatprep.subr.bf16.mxu0 0
      %1126 = vmatpush1.bf16.msra.mxu0 0
      %1127 = vmatprep.subr.bf16.mxu0 0
      %1128 = vmatpush1.bf16.msra.mxu0 0
      %1129 = vmatprep.subr.bf16.mxu0 0
      %1130 = vmatpush1.bf16.msra.mxu0 0
      %1131 = vmatprep.subr.bf16.mxu0 0
      %1132 = vmatpush1.bf16.msra.mxu0 0
      %1133 = vmatprep.subr.bf16.mxu0 0
      %1134 = vmatpush1.bf16.msra.mxu0 0
      %1135 = vmatprep.subr.bf16.mxu0 0
      %1136 = vmatpush1.bf16.msra.mxu0 0
      %1137 = vmatprep.subr.bf16.mxu0 0
      %1138 = vmatpush1.bf16.msra.mxu0 0
      %1139 = vmatprep.subr.bf16.mxu0 0
      %1140 = vmatpush1.bf16.msra.mxu0 0
      %1141 = vmatprep.subr.bf16.mxu0 0
      %1142 = vmatpush1.bf16.msra.mxu0 0
      %1143 = vmatprep.mubr.bf16.mxu0 0
      %1144 = vmatmul.mubr.bf16.gmra.mrb[0].mxu0 %v1106
      %v1145 = vpop.f32.mrb[0].mxu0
      %v1146 = vadd.f32 %v1100, %v1145
      %v1147 = vpop.f32.mrb[0].mxu0
      %v1148 = vpop.f32.mrb[0].mxu0
      %v1149 = vpop.f32.mrb[0].mxu0
      %1150 = vdwg.mxu0
      %1151 = vrot.lane.b32.xlu0 %v1049, 127
      %v1152 = vpop.permute.xlu0 %1151
      %v1153 = vsel %vm284, %v1152, 0.0
      %s1154 = scalar_lea.vmem %s1, 72
      %v1155 = vld [vmem:[%s1154] sm:$0xf]
      %v1156 = vpack.c.bf16 %v1153, %v1153
      %v1158 = vsel %vm187, %v1155, 0
      %v1161 = vsel %vm191, %v1156, 0
      %1163 = vmatprep.subr.bf16.mxu0 0
      %1164 = vmatpush1.bf16.msra.mxu0 %v1161
      %1165 = vmatprep.subr.bf16.mxu0 0
      %1166 = vmatpush1.bf16.msra.mxu0 0
      %1167 = vmatprep.subr.bf16.mxu0 0
      %1168 = vmatpush1.bf16.msra.mxu0 0
      %1169 = vmatprep.subr.bf16.mxu0 0
      %1170 = vmatpush1.bf16.msra.mxu0 0
      %1171 = vmatprep.subr.bf16.mxu0 0
      %1172 = vmatpush1.bf16.msra.mxu0 0
      %1173 = vmatprep.subr.bf16.mxu0 0
      %1174 = vmatpush1.bf16.msra.mxu0 0
      %1175 = vmatprep.subr.bf16.mxu0 0
      %1176 = vmatpush1.bf16.msra.mxu0 0
      %1177 = vmatprep.subr.bf16.mxu0 0
      %1178 = vmatpush1.bf16.msra.mxu0 0
      %1179 = vmatprep.subr.bf16.mxu0 0
      %1180 = vmatpush1.bf16.msra.mxu0 0
      %1181 = vmatprep.subr.bf16.mxu0 0
      %1182 = vmatpush1.bf16.msra.mxu0 0
      %1183 = vmatprep.subr.bf16.mxu0 0
      %1184 = vmatpush1.bf16.msra.mxu0 0
      %1185 = vmatprep.subr.bf16.mxu0 0
      %1186 = vmatpush1.bf16.msra.mxu0 0
      %1187 = vmatprep.subr.bf16.mxu0 0
      %1188 = vmatpush1.bf16.msra.mxu0 0
      %1189 = vmatprep.subr.bf16.mxu0 0
      %1190 = vmatpush1.bf16.msra.mxu0 0
      %1191 = vmatprep.subr.bf16.mxu0 0
      %1192 = vmatpush1.bf16.msra.mxu0 0
      %1193 = vmatprep.subr.bf16.mxu0 0
      %1194 = vmatpush1.bf16.msra.mxu0 0
      %1195 = vmatprep.mubr.bf16.mxu0 0
      %1196 = vmatmul.mubr.bf16.gmra.mrb[0].mxu0 %v1158
      %v1197 = vpop.f32.mrb[0].mxu0
      %v1198 = vadd.f32 0.0, %v1197
      %v1199 = vpop.f32.mrb[0].mxu0
      %v1200 = vpop.f32.mrb[0].mxu0
      %v1201 = vpop.f32.mrb[0].mxu0
      %1202 = vdwg.mxu0
      %v1203 = vadd.f32 %v1146, %v1198
      %s1204 = scalar_lea.vmem %s2, 48
      %v1205 = vld [vmem:[%s1204] sm:$0xff]
      %1207 = vset.pattern.permute.xlu0 0
      %1208 = vperm.xlu0 %1207, %v1205
      %v1209 = vpop.permute.xlu0 %1208
      %v1211 = vadd.f32 %v1203, %v1209
      %v1212 = vadd.f32 %v886, %v1211
      %v1213 = vmax.f32 %v1212, 0.0
      %v1214 = vsel %vm167, 1, 0
      %vm1215 = vcmp.eq.s32.totalorder %v1214, 1
      %v1216 = vsel %vm1215, %v1213, -inf
      %1217 = vmax.xlane.f32.xlu0 %v1216
      %v1218 = vpop.xlane.xlu0 %1217
      %s1219 = scalar_lea.vmem %s1, 76
      %v1220 = vld [vmem:[%s1219] sm:$0xf]
      %v1221 = vpack.c.bf16 %v1218, %v1218
      %s1222 = scalar_lea.vmem %s2, 56
      %v1223 = vld [vmem:[%s1222] sm:$0xff]
      %v1225 = vsel %vm187, %v1220, 0
      %v1228 = vsel %vm191, %v1221, 0
      %1230 = vmatprep.subr.bf16.mxu0 0
      %1231 = vmatpush1.bf16.msra.mxu0 %v1228
      %1232 = vmatprep.subr.bf16.mxu0 0
      %1233 = vmatpush1.bf16.msra.mxu0 0
      %1234 = vmatprep.subr.bf16.mxu0 0
      %1235 = vmatpush1.bf16.msra.mxu0 0
      %1236 = vmatprep.subr.bf16.mxu0 0
      %1237 = vmatpush1.bf16.msra.mxu0 0
      %1238 = vmatprep.subr.bf16.mxu0 0
      %1239 = vmatpush1.bf16.msra.mxu0 0
      %1240 = vmatprep.subr.bf16.mxu0 0
      %1241 = vmatpush1.bf16.msra.mxu0 0
      %1242 = vmatprep.subr.bf16.mxu0 0
      %1243 = vmatpush1.bf16.msra.mxu0 0
      %1244 = vmatprep.subr.bf16.mxu0 0
      %1245 = vmatpush1.bf16.msra.mxu0 0
      %1246 = vmatprep.subr.bf16.mxu0 0
      %1247 = vmatpush1.bf16.msra.mxu0 0
      %1248 = vmatprep.subr.bf16.mxu0 0
      %1249 = vmatpush1.bf16.msra.mxu0 0
      %1250 = vmatprep.subr.bf16.mxu0 0
      %1251 = vmatpush1.bf16.msra.mxu0 0
      %1252 = vmatprep.subr.bf16.mxu0 0
      %1253 = vmatpush1.bf16.msra.mxu0 0
      %1254 = vmatprep.subr.bf16.mxu0 0
      %1255 = vmatpush1.bf16.msra.mxu0 0
      %1256 = vmatprep.subr.bf16.mxu0 0
      %1257 = vmatpush1.bf16.msra.mxu0 0
      %1258 = vmatprep.subr.bf16.mxu0 0
      %1259 = vmatpush1.bf16.msra.mxu0 0
      %1260 = vmatprep.subr.bf16.mxu0 0
      %1261 = vmatpush1.bf16.msra.mxu0 0
      %1262 = vmatprep.mubr.bf16.mxu0 0
      %1263 = vmatmul.mubr.bf16.gmra.mrb[0].mxu0 %v1225
      %v1264 = vpop.f32.mrb[0].mxu0
      %v1265 = vadd.f32 %v1223, %v1264
      %v1266 = vpop.f32.mrb[0].mxu0
      %v1267 = vpop.f32.mrb[0].mxu0
      %v1268 = vpop.f32.mrb[0].mxu0
      %1269 = vdwg.mxu0
      %v1270 = vxor.u32 %v1265, 2147483648
      %v1271 = vmul.f32 %v1270, 1.442695
      %v1272 = vpow.pop %v1271
      %v1273 = vadd.f32 %v1272, 1.0
      %v1274 = vrcp.pop %v1273
      %v1275 = vmul.f32 1.0, %v1274
      %vm1276 = vcmask 0
      %1277 = vst.msk [vmem:[%s163] sm:$0x1] %vm1276, %v1275
      %p1278 = scmp.lt.s32.totalorder %s14, 1
      %s1279 = scalar_select %p1278, %s14, 1
      %s1280 = scalar_lea.vmem %s3, %s1279
      // Predicated region
      $region33: #{tpu_custom_call.1} parent=31 // pred_check
        %p1281 = pneg %p100
      $region34: #{tpu_custom_call.1} parent=31 // pred_check_branch
        %1283 = sbr.rel (%p1281) target = $region36
      $region35: #{tpu_custom_call.1} parent=31 // pred_region
        _
      $region36: #{tpu_custom_call.1} parent=31 // pred_fallthru
        _
    $region32: #{tpu_custom_call.1} parent=5 // pred_fallthru
      _
    %p1284 = scmp.le.s32.totalorder 2, %s9
    // Predicated region
    $region37: #{tpu_custom_call.1} parent=5 // pred_check
      %p1285 = pneg %p1284
    $region38: #{tpu_custom_call.1} parent=5 // pred_check_branch
      %1287 = sbr.rel (%p1285) target = $region40
    $region39: #{tpu_custom_call.1} parent=5 // pred_region
      %s1288 = ssub.s32 %s9, 2
      // Predicated region
      $region41: #{tpu_custom_call.1} parent=39 // pred_check
        %p1289 = pneg %p106
      $region42: #{tpu_custom_call.1} parent=39 // pred_check_branch
        %1291 = sbr.rel (%p1289) target = $region44
      $region43: #{tpu_custom_call.1} parent=39 // pred_region
        %p1292 = scmp.lt.s32.totalorder %s15, 1
        %s1293 = scalar_select %p1292, %s15, 1
        %s1294 = scalar_lea.vmem %s3, %s1293
      $region44: #{tpu_custom_call.1} parent=39 // pred_fallthru
        _
    $region40: #{tpu_custom_call.1} parent=5 // pred_fallthru
      _
  $region6: #{tpu_custom_call.1} parent=0 // loop_footer
    %s13 = sadd.s32 1, %s9
  $region7: #{tpu_custom_call.1} parent=0 // loop_footer_branch
    %8 = sbr.rel target = $region3
  $region8: #{tpu_custom_call.1} parent=0 // loop_exit
    _

</llo_original>
